<compile_context>
chip_gen: v7x
topology: tpu7x:2x2x1
jax: 0.10.0
libtpu: 0.0.40
codegen_flags: <defaults>
</compile_context>

<pallas_src>
import functools

import jax
import jax.numpy as jnp
from jax import lax
from jax.experimental import pallas as pl
from jax.experimental.pallas import tpu as pltpu

_LANES = 128


def _attention_kernel(x_ref, wqkv_ref, wout_ref, bout_ref, o_ref,
                      *, heads, dim_head):
    """One grid step == one batch element. All tiles fully resident in VMEM.

    x_ref    : (1, N, Dp)  bf16      Dp = D padded to a multiple of 128
    wqkv_ref : (Dp, 3*inner) bf16    inner = heads * dim_head, Q columns pre-scaled
    wout_ref : (inner, Dp) bf16
    bout_ref : (1, Dp)     f32
    o_ref    : (1, N, Dp)  out dtype
    """
    inner = heads * dim_head
    x = x_ref[0]                                      # (N, Dp) bf16
    n = x.shape[0]
    dp = x.shape[1]

    # qkv projection: single MXU matmul, bf16 operands, f32 accumulation.
    qkv = jnp.dot(x, wqkv_ref[...], preferred_element_type=jnp.float32)  # (N, 3*inner)

    y = jnp.zeros((n, dp), jnp.float32)               # output-projection accumulator

    # Static Python loop over a small head count keeps plain 2-D MXU matmuls.
    # (64-lane head slices on odd heads cost one XLU rotate each — cheap, own slot.)
    for h in range(heads):
        lo = h * dim_head
        q = qkv[:, lo:lo + dim_head].astype(jnp.bfloat16)                # (N, dh)
        k = qkv[:, inner + lo:inner + lo + dim_head].astype(jnp.bfloat16)
        v = qkv[:, 2 * inner + lo:2 * inner + lo + dim_head].astype(jnp.bfloat16)

        # q @ k^T without materializing a transpose: contract last dims of both.
        s = lax.dot_general(q, k,
                            dimension_numbers=(((1,), (1,)), ((), ())),
                            preferred_element_type=jnp.float32)          # (N, N)
        # scale already folded into Q weights on the host.
        s = s - jnp.max(s, axis=-1, keepdims=True)
        e = jnp.exp(s)
        p = e * pl.reciprocal(jnp.sum(e, axis=-1, keepdims=True), approx=True)

        head_out = jnp.dot(p.astype(jnp.bfloat16), v,
                           preferred_element_type=jnp.float32)           # (N, dh)

        # Per-head slice of the output projection (replaces concat + big matmul).
        y = y + jnp.dot(head_out.astype(jnp.bfloat16),
                        wout_ref[lo:lo + dim_head, :],
                        preferred_element_type=jnp.float32)              # (N, Dp)

    o_ref[0] = (y + bout_ref[...]).astype(o_ref.dtype)


def attention_forward(x, w_qkv, w_out, b_out, *, heads, dim_head):
    """x: (B, N, D); w_qkv: (D, 3*heads*dim_head); w_out: (heads*dim_head, D); b_out: (D,)."""
    B, N, D = x.shape
    inner = heads * dim_head
    scale = dim_head ** (-0.5)
    out_dtype = x.dtype

    # Fold softmax scale into the Q block of the qkv weight (exact reordering).
    w_qkv = w_qkv.at[:, :inner].multiply(scale)

    # Lane-dense layout plumbing: zero-pad embedding dim to a multiple of 128.
    # Exact: padded w_qkv rows are zero (qkv unchanged), padded w_out/b_out
    # columns are zero (extra output columns are exactly zero, sliced off below).
    Dp = ((D + _LANES - 1) // _LANES) * _LANES
    if Dp != D:
        x = jnp.pad(x, ((0, 0), (0, 0), (0, Dp - D)))
        w_qkv = jnp.pad(w_qkv, ((0, Dp - D), (0, 0)))
        w_out = jnp.pad(w_out, ((0, 0), (0, Dp - D)))
        b_out = jnp.pad(b_out, (0, Dp - D))

    # bf16 operands for all MXU matmuls (f32 accumulation inside the kernel).
    x_bf = x.astype(jnp.bfloat16)
    w_qkv_bf = w_qkv.astype(jnp.bfloat16)
    w_out_bf = w_out.astype(jnp.bfloat16)
    b_out_f32 = b_out.astype(jnp.float32).reshape(1, Dp)

    kernel = functools.partial(_attention_kernel, heads=heads, dim_head=dim_head)

    out = pl.pallas_call(
        kernel,
        out_shape=jax.ShapeDtypeStruct((B, N, Dp), out_dtype),
        grid_spec=pltpu.PrefetchScalarGridSpec(
            num_scalar_prefetch=0,
            grid=(B,),
            in_specs=[
                pl.BlockSpec((1, N, Dp), lambda b: (b, 0, 0)),
                pl.BlockSpec((Dp, 3 * inner), lambda b: (0, 0)),
                pl.BlockSpec((inner, Dp), lambda b: (0, 0)),
                pl.BlockSpec((1, Dp), lambda b: (0, 0)),
            ],
            out_specs=pl.BlockSpec((1, N, Dp), lambda b: (b, 0, 0)),
        ),
        compiler_params=pltpu.CompilerParams(
            dimension_semantics=("parallel",)),
    )(x_bf, w_qkv_bf, w_out_bf, b_out_f32)

    return out[..., :D] if Dp != D else out


def _reference(x, w_qkv, w_out, b_out, *, heads, dim_head):
    """Pure-JAX f32 reference matching the PyTorch forward."""
    B, N, D = x.shape
    inner = heads * dim_head
    scale = dim_head ** (-0.5)
    qkv = x @ w_qkv  # (B, N, 3*inner)
    q, k, v = jnp.split(qkv, 3, axis=-1)

    def split_heads(t):  # 'b n (h d) -> b h n d'
        return t.reshape(B, N, heads, dim_head).transpose(0, 2, 1, 3)

    q, k, v = map(split_heads, (q, k, v))
    dots = jnp.einsum("bhnd,bhmd->bhnm", q, k) * scale
    attn = jax.nn.softmax(dots, axis=-1)
    out = jnp.einsum("bhnm,bhmd->bhnd", attn, v)
    out = out.transpose(0, 2, 1, 3).reshape(B, N, inner)  # 'b h n d -> b n (h d)'
    return out @ w_out + b_out


if __name__ == "__main__":
    # Module config (PyTorch defaults: heads=8, dim_head=64); small data shapes.
    B, N, D = 2, 8, 32
    heads, dim_head = 8, 64
    inner = heads * dim_head

    key = jax.random.PRNGKey(0)
    kx, kq, kw, kb = jax.random.split(key, 4)

    x = jax.random.normal(kx, (B, N, D), dtype=jnp.float32)

    # Deterministic param init mimicking nn.Linear: U(-1/sqrt(fan_in), 1/sqrt(fan_in)).
    # Stored transposed, i.e. (in_features, out_features).
    bound_qkv = 1.0 / (D ** 0.5)
    w_qkv = jax.random.uniform(kq, (D, 3 * inner), jnp.float32, -bound_qkv, bound_qkv)
    bound_out = 1.0 / (inner ** 0.5)
    w_out = jax.random.uniform(kw, (inner, D), jnp.float32, -bound_out, bound_out)
    b_out = jax.random.uniform(kb, (D,), jnp.float32, -bound_out, bound_out)

    y = attention_forward(x, w_qkv, w_out, b_out, heads=heads, dim_head=dim_head)
    y = jax.block_until_ready(y)

    y_ref = _reference(x, w_qkv, w_out, b_out, heads=heads, dim_head=dim_head)
    assert y.shape == (B, N, D)
    # bf16 MXU operands + approx reciprocal vs f32 reference -> relaxed tolerance.
    assert jnp.allclose(y, y_ref, atol=2e-2, rtol=2e-2), "mismatch vs reference"

    print("KERNEL_OK")
</pallas_src>

<mosaic_0001>
module attributes {stable_mosaic.version = 11 : i64} {
  func.func @_attention_kernel(%arg0: i32, %arg1: memref<1x8x128xbf16, #tpu.memory_space<vmem>>, %arg2: memref<128x1536xbf16, #tpu.memory_space<vmem>>, %arg3: memref<512x128xbf16, #tpu.memory_space<vmem>>, %arg4: memref<1x128xf32, #tpu.memory_space<vmem>>, %arg5: memref<1x8x128xf32, #tpu.memory_space<vmem>>) attributes {dimension_semantics = [#tpu.dimension_semantics<parallel>], iteration_bounds = array<i64: 2>, scalar_prefetch = 0 : i64, scratch_operands = 0 : i64, tpu.core_type = #tpu.core_type<tc>, window_params = [{transform_indices = @transform_0, window_bounds = array<i64: 1, 8, 128>}, {pipeline_mode = #tpu.pipeline_mode<synchronous>, transform_indices = @transform_1, window_bounds = array<i64: 128, 1536>}, {pipeline_mode = #tpu.pipeline_mode<synchronous>, transform_indices = @transform_2, window_bounds = array<i64: 512, 128>}, {pipeline_mode = #tpu.pipeline_mode<synchronous>, transform_indices = @transform_3, window_bounds = array<i64: 1, 128>}, {transform_indices = @transform_4, window_bounds = array<i64: 1, 8, 128>}]} {
    %c0 = arith.constant 0 : index
    %c0_0 = arith.constant 0 : index
    %c0_1 = arith.constant 0 : index
    %0 = vector.load %arg1[%c0, %c0_0, %c0_1] : memref<1x8x128xbf16, #tpu.memory_space<vmem>>, vector<1x8x128xbf16>
    %1 = vector.shape_cast %0 : vector<1x8x128xbf16> to vector<8x128xbf16>
    %c0_2 = arith.constant 0 : index
    %c0_3 = arith.constant 0 : index
    %2 = vector.load %arg2[%c0_2, %c0_3] : memref<128x1536xbf16, #tpu.memory_space<vmem>>, vector<128x1536xbf16>
    %cst = arith.constant dense<0.000000e+00> : vector<8x1536xf32>
    %3 = tpu.matmul %1, %2, %cst {dimension_numbers = #tpu.dot_dimension_numbers<[1], [0], [0], [1], [0, 0, 1, 1], [], []>} : vector<8x128xbf16>, vector<128x1536xbf16>, vector<8x1536xf32> -> vector<8x1536xf32>
    %cst_4 = arith.constant 0.000000e+00 : f32
    %4 = vector.broadcast %cst_4 : f32 to vector<8x128xf32>
    %5 = vector.extract_strided_slice %3 {offsets = [0, 0], sizes = [8, 64], strides = [1, 1]} : vector<8x1536xf32> to vector<8x64xf32>
    %6 = arith.truncf %5 : vector<8x64xf32> to vector<8x64xbf16>
    %7 = vector.extract_strided_slice %3 {offsets = [0, 512], sizes = [8, 64], strides = [1, 1]} : vector<8x1536xf32> to vector<8x64xf32>
    %8 = arith.truncf %7 : vector<8x64xf32> to vector<8x64xbf16>
    %9 = vector.extract_strided_slice %3 {offsets = [0, 1024], sizes = [8, 64], strides = [1, 1]} : vector<8x1536xf32> to vector<8x64xf32>
    %10 = arith.truncf %9 : vector<8x64xf32> to vector<8x64xbf16>
    %cst_5 = arith.constant dense<0.000000e+00> : vector<8x8xf32>
    %11 = tpu.matmul %6, %8, %cst_5 {dimension_numbers = #tpu.dot_dimension_numbers<[1], [1], [0], [0], [0, 0, 1, 0], [], []>} : vector<8x64xbf16>, vector<8x64xbf16>, vector<8x8xf32> -> vector<8x8xf32>
    %cst_6 = arith.constant dense<0xFF800000> : vector<8xf32>
    %12 = vector.multi_reduction <maximumf>, %11, %cst_6 [1] : vector<8x8xf32> to vector<8xf32>
    %13 = vector.shape_cast %12 : vector<8xf32> to vector<8x1xf32>
    %14 = vector.broadcast %13 : vector<8x1xf32> to vector<8x8xf32>
    %15 = arith.subf %11, %14 : vector<8x8xf32>
    %16 = math.exp %15 : vector<8x8xf32>
    %cst_7 = arith.constant dense<0.000000e+00> : vector<8xf32>
    %17 = vector.multi_reduction <add>, %16, %cst_7 [1] : vector<8x8xf32> to vector<8xf32>
    %18 = vector.shape_cast %17 : vector<8xf32> to vector<8x1xf32>
    %19 = tpu.reciprocal %18 {approx = true} : vector<8x1xf32> -> vector<8x1xf32>
    %20 = vector.broadcast %19 : vector<8x1xf32> to vector<8x8xf32>
    %21 = arith.mulf %16, %20 : vector<8x8xf32>
    %22 = arith.truncf %21 : vector<8x8xf32> to vector<8x8xbf16>
    %cst_8 = arith.constant dense<0.000000e+00> : vector<8x64xf32>
    %23 = tpu.matmul %22, %10, %cst_8 {dimension_numbers = #tpu.dot_dimension_numbers<[1], [0], [0], [1], [0, 0, 1, 1], [], []>} : vector<8x8xbf16>, vector<8x64xbf16>, vector<8x64xf32> -> vector<8x64xf32>
    %24 = arith.truncf %23 : vector<8x64xf32> to vector<8x64xbf16>
    %c0_9 = arith.constant 0 : index
    %c0_10 = arith.constant 0 : index
    %25 = vector.load %arg3[%c0_9, %c0_10] : memref<512x128xbf16, #tpu.memory_space<vmem>>, vector<64x128xbf16>
    %cst_11 = arith.constant dense<0.000000e+00> : vector<8x128xf32>
    %26 = tpu.matmul %24, %25, %cst_11 {dimension_numbers = #tpu.dot_dimension_numbers<[1], [0], [0], [1], [0, 0, 1, 1], [], []>} : vector<8x64xbf16>, vector<64x128xbf16>, vector<8x128xf32> -> vector<8x128xf32>
    %27 = arith.addf %4, %26 : vector<8x128xf32>
    %28 = vector.extract_strided_slice %3 {offsets = [0, 64], sizes = [8, 64], strides = [1, 1]} : vector<8x1536xf32> to vector<8x64xf32>
    %29 = arith.truncf %28 : vector<8x64xf32> to vector<8x64xbf16>
    %30 = vector.extract_strided_slice %3 {offsets = [0, 576], sizes = [8, 64], strides = [1, 1]} : vector<8x1536xf32> to vector<8x64xf32>
    %31 = arith.truncf %30 : vector<8x64xf32> to vector<8x64xbf16>
    %32 = vector.extract_strided_slice %3 {offsets = [0, 1088], sizes = [8, 64], strides = [1, 1]} : vector<8x1536xf32> to vector<8x64xf32>
    %33 = arith.truncf %32 : vector<8x64xf32> to vector<8x64xbf16>
    %cst_12 = arith.constant dense<0.000000e+00> : vector<8x8xf32>
    %34 = tpu.matmul %29, %31, %cst_12 {dimension_numbers = #tpu.dot_dimension_numbers<[1], [1], [0], [0], [0, 0, 1, 0], [], []>} : vector<8x64xbf16>, vector<8x64xbf16>, vector<8x8xf32> -> vector<8x8xf32>
    %cst_13 = arith.constant dense<0xFF800000> : vector<8xf32>
    %35 = vector.multi_reduction <maximumf>, %34, %cst_13 [1] : vector<8x8xf32> to vector<8xf32>
    %36 = vector.shape_cast %35 : vector<8xf32> to vector<8x1xf32>
    %37 = vector.broadcast %36 : vector<8x1xf32> to vector<8x8xf32>
    %38 = arith.subf %34, %37 : vector<8x8xf32>
    %39 = math.exp %38 : vector<8x8xf32>
    %cst_14 = arith.constant dense<0.000000e+00> : vector<8xf32>
    %40 = vector.multi_reduction <add>, %39, %cst_14 [1] : vector<8x8xf32> to vector<8xf32>
    %41 = vector.shape_cast %40 : vector<8xf32> to vector<8x1xf32>
    %42 = tpu.reciprocal %41 {approx = true} : vector<8x1xf32> -> vector<8x1xf32>
    %43 = vector.broadcast %42 : vector<8x1xf32> to vector<8x8xf32>
    %44 = arith.mulf %39, %43 : vector<8x8xf32>
    %45 = arith.truncf %44 : vector<8x8xf32> to vector<8x8xbf16>
    %cst_15 = arith.constant dense<0.000000e+00> : vector<8x64xf32>
    %46 = tpu.matmul %45, %33, %cst_15 {dimension_numbers = #tpu.dot_dimension_numbers<[1], [0], [0], [1], [0, 0, 1, 1], [], []>} : vector<8x8xbf16>, vector<8x64xbf16>, vector<8x64xf32> -> vector<8x64xf32>
    %47 = arith.truncf %46 : vector<8x64xf32> to vector<8x64xbf16>
    %c64 = arith.constant 64 : index
    %c0_16 = arith.constant 0 : index
    %48 = vector.load %arg3[%c64, %c0_16] : memref<512x128xbf16, #tpu.memory_space<vmem>>, vector<64x128xbf16>
    %cst_17 = arith.constant dense<0.000000e+00> : vector<8x128xf32>
    %49 = tpu.matmul %47, %48, %cst_17 {dimension_numbers = #tpu.dot_dimension_numbers<[1], [0], [0], [1], [0, 0, 1, 1], [], []>} : vector<8x64xbf16>, vector<64x128xbf16>, vector<8x128xf32> -> vector<8x128xf32>
    %50 = arith.addf %27, %49 : vector<8x128xf32>
    %51 = vector.extract_strided_slice %3 {offsets = [0, 128], sizes = [8, 64], strides = [1, 1]} : vector<8x1536xf32> to vector<8x64xf32>
    %52 = arith.truncf %51 : vector<8x64xf32> to vector<8x64xbf16>
    %53 = vector.extract_strided_slice %3 {offsets = [0, 640], sizes = [8, 64], strides = [1, 1]} : vector<8x1536xf32> to vector<8x64xf32>
    %54 = arith.truncf %53 : vector<8x64xf32> to vector<8x64xbf16>
    %55 = vector.extract_strided_slice %3 {offsets = [0, 1152], sizes = [8, 64], strides = [1, 1]} : vector<8x1536xf32> to vector<8x64xf32>
    %56 = arith.truncf %55 : vector<8x64xf32> to vector<8x64xbf16>
    %cst_18 = arith.constant dense<0.000000e+00> : vector<8x8xf32>
    %57 = tpu.matmul %52, %54, %cst_18 {dimension_numbers = #tpu.dot_dimension_numbers<[1], [1], [0], [0], [0, 0, 1, 0], [], []>} : vector<8x64xbf16>, vector<8x64xbf16>, vector<8x8xf32> -> vector<8x8xf32>
    %cst_19 = arith.constant dense<0xFF800000> : vector<8xf32>
    %58 = vector.multi_reduction <maximumf>, %57, %cst_19 [1] : vector<8x8xf32> to vector<8xf32>
    %59 = vector.shape_cast %58 : vector<8xf32> to vector<8x1xf32>
    %60 = vector.broadcast %59 : vector<8x1xf32> to vector<8x8xf32>
    %61 = arith.subf %57, %60 : vector<8x8xf32>
    %62 = math.exp %61 : vector<8x8xf32>
    %cst_20 = arith.constant dense<0.000000e+00> : vector<8xf32>
    %63 = vector.multi_reduction <add>, %62, %cst_20 [1] : vector<8x8xf32> to vector<8xf32>
    %64 = vector.shape_cast %63 : vector<8xf32> to vector<8x1xf32>
    %65 = tpu.reciprocal %64 {approx = true} : vector<8x1xf32> -> vector<8x1xf32>
    %66 = vector.broadcast %65 : vector<8x1xf32> to vector<8x8xf32>
    %67 = arith.mulf %62, %66 : vector<8x8xf32>
    %68 = arith.truncf %67 : vector<8x8xf32> to vector<8x8xbf16>
    %cst_21 = arith.constant dense<0.000000e+00> : vector<8x64xf32>
    %69 = tpu.matmul %68, %56, %cst_21 {dimension_numbers = #tpu.dot_dimension_numbers<[1], [0], [0], [1], [0, 0, 1, 1], [], []>} : vector<8x8xbf16>, vector<8x64xbf16>, vector<8x64xf32> -> vector<8x64xf32>
    %70 = arith.truncf %69 : vector<8x64xf32> to vector<8x64xbf16>
    %c128 = arith.constant 128 : index
    %c0_22 = arith.constant 0 : index
    %71 = vector.load %arg3[%c128, %c0_22] : memref<512x128xbf16, #tpu.memory_space<vmem>>, vector<64x128xbf16>
    %cst_23 = arith.constant dense<0.000000e+00> : vector<8x128xf32>
    %72 = tpu.matmul %70, %71, %cst_23 {dimension_numbers = #tpu.dot_dimension_numbers<[1], [0], [0], [1], [0, 0, 1, 1], [], []>} : vector<8x64xbf16>, vector<64x128xbf16>, vector<8x128xf32> -> vector<8x128xf32>
    %73 = arith.addf %50, %72 : vector<8x128xf32>
    %74 = vector.extract_strided_slice %3 {offsets = [0, 192], sizes = [8, 64], strides = [1, 1]} : vector<8x1536xf32> to vector<8x64xf32>
    %75 = arith.truncf %74 : vector<8x64xf32> to vector<8x64xbf16>
    %76 = vector.extract_strided_slice %3 {offsets = [0, 704], sizes = [8, 64], strides = [1, 1]} : vector<8x1536xf32> to vector<8x64xf32>
    %77 = arith.truncf %76 : vector<8x64xf32> to vector<8x64xbf16>
    %78 = vector.extract_strided_slice %3 {offsets = [0, 1216], sizes = [8, 64], strides = [1, 1]} : vector<8x1536xf32> to vector<8x64xf32>
    %79 = arith.truncf %78 : vector<8x64xf32> to vector<8x64xbf16>
    %cst_24 = arith.constant dense<0.000000e+00> : vector<8x8xf32>
    %80 = tpu.matmul %75, %77, %cst_24 {dimension_numbers = #tpu.dot_dimension_numbers<[1], [1], [0], [0], [0, 0, 1, 0], [], []>} : vector<8x64xbf16>, vector<8x64xbf16>, vector<8x8xf32> -> vector<8x8xf32>
    %cst_25 = arith.constant dense<0xFF800000> : vector<8xf32>
    %81 = vector.multi_reduction <maximumf>, %80, %cst_25 [1] : vector<8x8xf32> to vector<8xf32>
    %82 = vector.shape_cast %81 : vector<8xf32> to vector<8x1xf32>
    %83 = vector.broadcast %82 : vector<8x1xf32> to vector<8x8xf32>
    %84 = arith.subf %80, %83 : vector<8x8xf32>
    %85 = math.exp %84 : vector<8x8xf32>
    %cst_26 = arith.constant dense<0.000000e+00> : vector<8xf32>
    %86 = vector.multi_reduction <add>, %85, %cst_26 [1] : vector<8x8xf32> to vector<8xf32>
    %87 = vector.shape_cast %86 : vector<8xf32> to vector<8x1xf32>
    %88 = tpu.reciprocal %87 {approx = true} : vector<8x1xf32> -> vector<8x1xf32>
    %89 = vector.broadcast %88 : vector<8x1xf32> to vector<8x8xf32>
    %90 = arith.mulf %85, %89 : vector<8x8xf32>
    %91 = arith.truncf %90 : vector<8x8xf32> to vector<8x8xbf16>
    %cst_27 = arith.constant dense<0.000000e+00> : vector<8x64xf32>
    %92 = tpu.matmul %91, %79, %cst_27 {dimension_numbers = #tpu.dot_dimension_numbers<[1], [0], [0], [1], [0, 0, 1, 1], [], []>} : vector<8x8xbf16>, vector<8x64xbf16>, vector<8x64xf32> -> vector<8x64xf32>
    %93 = arith.truncf %92 : vector<8x64xf32> to vector<8x64xbf16>
    %c192 = arith.constant 192 : index
    %c0_28 = arith.constant 0 : index
    %94 = vector.load %arg3[%c192, %c0_28] : memref<512x128xbf16, #tpu.memory_space<vmem>>, vector<64x128xbf16>
    %cst_29 = arith.constant dense<0.000000e+00> : vector<8x128xf32>
    %95 = tpu.matmul %93, %94, %cst_29 {dimension_numbers = #tpu.dot_dimension_numbers<[1], [0], [0], [1], [0, 0, 1, 1], [], []>} : vector<8x64xbf16>, vector<64x128xbf16>, vector<8x128xf32> -> vector<8x128xf32>
    %96 = arith.addf %73, %95 : vector<8x128xf32>
    %97 = vector.extract_strided_slice %3 {offsets = [0, 256], sizes = [8, 64], strides = [1, 1]} : vector<8x1536xf32> to vector<8x64xf32>
    %98 = arith.truncf %97 : vector<8x64xf32> to vector<8x64xbf16>
    %99 = vector.extract_strided_slice %3 {offsets = [0, 768], sizes = [8, 64], strides = [1, 1]} : vector<8x1536xf32> to vector<8x64xf32>
    %100 = arith.truncf %99 : vector<8x64xf32> to vector<8x64xbf16>
    %101 = vector.extract_strided_slice %3 {offsets = [0, 1280], sizes = [8, 64], strides = [1, 1]} : vector<8x1536xf32> to vector<8x64xf32>
    %102 = arith.truncf %101 : vector<8x64xf32> to vector<8x64xbf16>
    %cst_30 = arith.constant dense<0.000000e+00> : vector<8x8xf32>
    %103 = tpu.matmul %98, %100, %cst_30 {dimension_numbers = #tpu.dot_dimension_numbers<[1], [1], [0], [0], [0, 0, 1, 0], [], []>} : vector<8x64xbf16>, vector<8x64xbf16>, vector<8x8xf32> -> vector<8x8xf32>
    %cst_31 = arith.constant dense<0xFF800000> : vector<8xf32>
    %104 = vector.multi_reduction <maximumf>, %103, %cst_31 [1] : vector<8x8xf32> to vector<8xf32>
    %105 = vector.shape_cast %104 : vector<8xf32> to vector<8x1xf32>
    %106 = vector.broadcast %105 : vector<8x1xf32> to vector<8x8xf32>
    %107 = arith.subf %103, %106 : vector<8x8xf32>
    %108 = math.exp %107 : vector<8x8xf32>
    %cst_32 = arith.constant dense<0.000000e+00> : vector<8xf32>
    %109 = vector.multi_reduction <add>, %108, %cst_32 [1] : vector<8x8xf32> to vector<8xf32>
    %110 = vector.shape_cast %109 : vector<8xf32> to vector<8x1xf32>
    %111 = tpu.reciprocal %110 {approx = true} : vector<8x1xf32> -> vector<8x1xf32>
    %112 = vector.broadcast %111 : vector<8x1xf32> to vector<8x8xf32>
    %113 = arith.mulf %108, %112 : vector<8x8xf32>
    %114 = arith.truncf %113 : vector<8x8xf32> to vector<8x8xbf16>
    %cst_33 = arith.constant dense<0.000000e+00> : vector<8x64xf32>
    %115 = tpu.matmul %114, %102, %cst_33 {dimension_numbers = #tpu.dot_dimension_numbers<[1], [0], [0], [1], [0, 0, 1, 1], [], []>} : vector<8x8xbf16>, vector<8x64xbf16>, vector<8x64xf32> -> vector<8x64xf32>
    %116 = arith.truncf %115 : vector<8x64xf32> to vector<8x64xbf16>
    %c256 = arith.constant 256 : index
    %c0_34 = arith.constant 0 : index
    %117 = vector.load %arg3[%c256, %c0_34] : memref<512x128xbf16, #tpu.memory_space<vmem>>, vector<64x128xbf16>
    %cst_35 = arith.constant dense<0.000000e+00> : vector<8x128xf32>
    %118 = tpu.matmul %116, %117, %cst_35 {dimension_numbers = #tpu.dot_dimension_numbers<[1], [0], [0], [1], [0, 0, 1, 1], [], []>} : vector<8x64xbf16>, vector<64x128xbf16>, vector<8x128xf32> -> vector<8x128xf32>
    %119 = arith.addf %96, %118 : vector<8x128xf32>
    %120 = vector.extract_strided_slice %3 {offsets = [0, 320], sizes = [8, 64], strides = [1, 1]} : vector<8x1536xf32> to vector<8x64xf32>
    %121 = arith.truncf %120 : vector<8x64xf32> to vector<8x64xbf16>
    %122 = vector.extract_strided_slice %3 {offsets = [0, 832], sizes = [8, 64], strides = [1, 1]} : vector<8x1536xf32> to vector<8x64xf32>
    %123 = arith.truncf %122 : vector<8x64xf32> to vector<8x64xbf16>
    %124 = vector.extract_strided_slice %3 {offsets = [0, 1344], sizes = [8, 64], strides = [1, 1]} : vector<8x1536xf32> to vector<8x64xf32>
    %125 = arith.truncf %124 : vector<8x64xf32> to vector<8x64xbf16>
    %cst_36 = arith.constant dense<0.000000e+00> : vector<8x8xf32>
    %126 = tpu.matmul %121, %123, %cst_36 {dimension_numbers = #tpu.dot_dimension_numbers<[1], [1], [0], [0], [0, 0, 1, 0], [], []>} : vector<8x64xbf16>, vector<8x64xbf16>, vector<8x8xf32> -> vector<8x8xf32>
    %cst_37 = arith.constant dense<0xFF800000> : vector<8xf32>
    %127 = vector.multi_reduction <maximumf>, %126, %cst_37 [1] : vector<8x8xf32> to vector<8xf32>
    %128 = vector.shape_cast %127 : vector<8xf32> to vector<8x1xf32>
    %129 = vector.broadcast %128 : vector<8x1xf32> to vector<8x8xf32>
    %130 = arith.subf %126, %129 : vector<8x8xf32>
    %131 = math.exp %130 : vector<8x8xf32>
    %cst_38 = arith.constant dense<0.000000e+00> : vector<8xf32>
    %132 = vector.multi_reduction <add>, %131, %cst_38 [1] : vector<8x8xf32> to vector<8xf32>
    %133 = vector.shape_cast %132 : vector<8xf32> to vector<8x1xf32>
    %134 = tpu.reciprocal %133 {approx = true} : vector<8x1xf32> -> vector<8x1xf32>
    %135 = vector.broadcast %134 : vector<8x1xf32> to vector<8x8xf32>
    %136 = arith.mulf %131, %135 : vector<8x8xf32>
    %137 = arith.truncf %136 : vector<8x8xf32> to vector<8x8xbf16>
    %cst_39 = arith.constant dense<0.000000e+00> : vector<8x64xf32>
    %138 = tpu.matmul %137, %125, %cst_39 {dimension_numbers = #tpu.dot_dimension_numbers<[1], [0], [0], [1], [0, 0, 1, 1], [], []>} : vector<8x8xbf16>, vector<8x64xbf16>, vector<8x64xf32> -> vector<8x64xf32>
    %139 = arith.truncf %138 : vector<8x64xf32> to vector<8x64xbf16>
    %c320 = arith.constant 320 : index
    %c0_40 = arith.constant 0 : index
    %140 = vector.load %arg3[%c320, %c0_40] : memref<512x128xbf16, #tpu.memory_space<vmem>>, vector<64x128xbf16>
    %cst_41 = arith.constant dense<0.000000e+00> : vector<8x128xf32>
    %141 = tpu.matmul %139, %140, %cst_41 {dimension_numbers = #tpu.dot_dimension_numbers<[1], [0], [0], [1], [0, 0, 1, 1], [], []>} : vector<8x64xbf16>, vector<64x128xbf16>, vector<8x128xf32> -> vector<8x128xf32>
    %142 = arith.addf %119, %141 : vector<8x128xf32>
    %143 = vector.extract_strided_slice %3 {offsets = [0, 384], sizes = [8, 64], strides = [1, 1]} : vector<8x1536xf32> to vector<8x64xf32>
    %144 = arith.truncf %143 : vector<8x64xf32> to vector<8x64xbf16>
    %145 = vector.extract_strided_slice %3 {offsets = [0, 896], sizes = [8, 64], strides = [1, 1]} : vector<8x1536xf32> to vector<8x64xf32>
    %146 = arith.truncf %145 : vector<8x64xf32> to vector<8x64xbf16>
    %147 = vector.extract_strided_slice %3 {offsets = [0, 1408], sizes = [8, 64], strides = [1, 1]} : vector<8x1536xf32> to vector<8x64xf32>
    %148 = arith.truncf %147 : vector<8x64xf32> to vector<8x64xbf16>
    %cst_42 = arith.constant dense<0.000000e+00> : vector<8x8xf32>
    %149 = tpu.matmul %144, %146, %cst_42 {dimension_numbers = #tpu.dot_dimension_numbers<[1], [1], [0], [0], [0, 0, 1, 0], [], []>} : vector<8x64xbf16>, vector<8x64xbf16>, vector<8x8xf32> -> vector<8x8xf32>
    %cst_43 = arith.constant dense<0xFF800000> : vector<8xf32>
    %150 = vector.multi_reduction <maximumf>, %149, %cst_43 [1] : vector<8x8xf32> to vector<8xf32>
    %151 = vector.shape_cast %150 : vector<8xf32> to vector<8x1xf32>
    %152 = vector.broadcast %151 : vector<8x1xf32> to vector<8x8xf32>
    %153 = arith.subf %149, %152 : vector<8x8xf32>
    %154 = math.exp %153 : vector<8x8xf32>
    %cst_44 = arith.constant dense<0.000000e+00> : vector<8xf32>
    %155 = vector.multi_reduction <add>, %154, %cst_44 [1] : vector<8x8xf32> to vector<8xf32>
    %156 = vector.shape_cast %155 : vector<8xf32> to vector<8x1xf32>
    %157 = tpu.reciprocal %156 {approx = true} : vector<8x1xf32> -> vector<8x1xf32>
    %158 = vector.broadcast %157 : vector<8x1xf32> to vector<8x8xf32>
    %159 = arith.mulf %154, %158 : vector<8x8xf32>
    %160 = arith.truncf %159 : vector<8x8xf32> to vector<8x8xbf16>
    %cst_45 = arith.constant dense<0.000000e+00> : vector<8x64xf32>
    %161 = tpu.matmul %160, %148, %cst_45 {dimension_numbers = #tpu.dot_dimension_numbers<[1], [0], [0], [1], [0, 0, 1, 1], [], []>} : vector<8x8xbf16>, vector<8x64xbf16>, vector<8x64xf32> -> vector<8x64xf32>
    %162 = arith.truncf %161 : vector<8x64xf32> to vector<8x64xbf16>
    %c384 = arith.constant 384 : index
    %c0_46 = arith.constant 0 : index
    %163 = vector.load %arg3[%c384, %c0_46] : memref<512x128xbf16, #tpu.memory_space<vmem>>, vector<64x128xbf16>
    %cst_47 = arith.constant dense<0.000000e+00> : vector<8x128xf32>
    %164 = tpu.matmul %162, %163, %cst_47 {dimension_numbers = #tpu.dot_dimension_numbers<[1], [0], [0], [1], [0, 0, 1, 1], [], []>} : vector<8x64xbf16>, vector<64x128xbf16>, vector<8x128xf32> -> vector<8x128xf32>
    %165 = arith.addf %142, %164 : vector<8x128xf32>
    %166 = vector.extract_strided_slice %3 {offsets = [0, 448], sizes = [8, 64], strides = [1, 1]} : vector<8x1536xf32> to vector<8x64xf32>
    %167 = arith.truncf %166 : vector<8x64xf32> to vector<8x64xbf16>
    %168 = vector.extract_strided_slice %3 {offsets = [0, 960], sizes = [8, 64], strides = [1, 1]} : vector<8x1536xf32> to vector<8x64xf32>
    %169 = arith.truncf %168 : vector<8x64xf32> to vector<8x64xbf16>
    %170 = vector.extract_strided_slice %3 {offsets = [0, 1472], sizes = [8, 64], strides = [1, 1]} : vector<8x1536xf32> to vector<8x64xf32>
    %171 = arith.truncf %170 : vector<8x64xf32> to vector<8x64xbf16>
    %cst_48 = arith.constant dense<0.000000e+00> : vector<8x8xf32>
    %172 = tpu.matmul %167, %169, %cst_48 {dimension_numbers = #tpu.dot_dimension_numbers<[1], [1], [0], [0], [0, 0, 1, 0], [], []>} : vector<8x64xbf16>, vector<8x64xbf16>, vector<8x8xf32> -> vector<8x8xf32>
    %cst_49 = arith.constant dense<0xFF800000> : vector<8xf32>
    %173 = vector.multi_reduction <maximumf>, %172, %cst_49 [1] : vector<8x8xf32> to vector<8xf32>
    %174 = vector.shape_cast %173 : vector<8xf32> to vector<8x1xf32>
    %175 = vector.broadcast %174 : vector<8x1xf32> to vector<8x8xf32>
    %176 = arith.subf %172, %175 : vector<8x8xf32>
    %177 = math.exp %176 : vector<8x8xf32>
    %cst_50 = arith.constant dense<0.000000e+00> : vector<8xf32>
    %178 = vector.multi_reduction <add>, %177, %cst_50 [1] : vector<8x8xf32> to vector<8xf32>
    %179 = vector.shape_cast %178 : vector<8xf32> to vector<8x1xf32>
    %180 = tpu.reciprocal %179 {approx = true} : vector<8x1xf32> -> vector<8x1xf32>
    %181 = vector.broadcast %180 : vector<8x1xf32> to vector<8x8xf32>
    %182 = arith.mulf %177, %181 : vector<8x8xf32>
    %183 = arith.truncf %182 : vector<8x8xf32> to vector<8x8xbf16>
    %cst_51 = arith.constant dense<0.000000e+00> : vector<8x64xf32>
    %184 = tpu.matmul %183, %171, %cst_51 {dimension_numbers = #tpu.dot_dimension_numbers<[1], [0], [0], [1], [0, 0, 1, 1], [], []>} : vector<8x8xbf16>, vector<8x64xbf16>, vector<8x64xf32> -> vector<8x64xf32>
    %185 = arith.truncf %184 : vector<8x64xf32> to vector<8x64xbf16>
    %c448 = arith.constant 448 : index
    %c0_52 = arith.constant 0 : index
    %186 = vector.load %arg3[%c448, %c0_52] : memref<512x128xbf16, #tpu.memory_space<vmem>>, vector<64x128xbf16>
    %cst_53 = arith.constant dense<0.000000e+00> : vector<8x128xf32>
    %187 = tpu.matmul %185, %186, %cst_53 {dimension_numbers = #tpu.dot_dimension_numbers<[1], [0], [0], [1], [0, 0, 1, 1], [], []>} : vector<8x64xbf16>, vector<64x128xbf16>, vector<8x128xf32> -> vector<8x128xf32>
    %188 = arith.addf %165, %187 : vector<8x128xf32>
    %c0_54 = arith.constant 0 : index
    %c0_55 = arith.constant 0 : index
    %189 = vector.load %arg4[%c0_54, %c0_55] : memref<1x128xf32, #tpu.memory_space<vmem>>, vector<1x128xf32>
    %190 = vector.broadcast %189 : vector<1x128xf32> to vector<8x128xf32>
    %191 = arith.addf %188, %190 : vector<8x128xf32>
    %c0_56 = arith.constant 0 : index
    %c0_57 = arith.constant 0 : index
    %c0_58 = arith.constant 0 : index
    %192 = vector.load %arg5[%c0_56, %c0_57, %c0_58] : memref<1x8x128xf32, #tpu.memory_space<vmem>>, vector<1x8x128xf32>
    %193 = vector.shape_cast %192 : vector<1x8x128xf32> to vector<8x128xf32>
    %194 = vector.shape_cast %191 : vector<8x128xf32> to vector<1x8x128xf32>
    tpu.vector_store %arg5[%c0_56, %c0_57, %c0_58], %194 {strides = array<i32>} : memref<1x8x128xf32, #tpu.memory_space<vmem>>, vector<1x8x128xf32>,
    return
  }
  func.func @transform_0(%arg0: i32) -> (i32, i32, i32) {
    %c0_i32 = arith.constant 0 : i32
    %c0_i32_0 = arith.constant 0 : i32
    %c0_i32_1 = arith.constant 0 : i32
    return %arg0, %c0_i32, %c0_i32_0 : i32, i32, i32
  }
  func.func @transform_1(%arg0: i32) -> (i32, i32) {
    %c0_i32 = arith.constant 0 : i32
    %c0_i32_0 = arith.constant 0 : i32
    %c0_i32_1 = arith.constant 0 : i32
    return %c0_i32, %c0_i32_0 : i32, i32
  }
  func.func @transform_2(%arg0: i32) -> (i32, i32) {
    %c0_i32 = arith.constant 0 : i32
    %c0_i32_0 = arith.constant 0 : i32
    %c0_i32_1 = arith.constant 0 : i32
    return %c0_i32, %c0_i32_0 : i32, i32
  }
  func.func @transform_3(%arg0: i32) -> (i32, i32) {
    %c0_i32 = arith.constant 0 : i32
    %c0_i32_0 = arith.constant 0 : i32
    %c0_i32_1 = arith.constant 0 : i32
    return %c0_i32, %c0_i32_0 : i32, i32
  }
  func.func @transform_4(%arg0: i32) -> (i32, i32, i32) {
    %c0_i32 = arith.constant 0 : i32
    %c0_i32_0 = arith.constant 0 : i32
    %c0_i32_1 = arith.constant 0 : i32
    return %arg0, %c0_i32, %c0_i32_0 : i32, i32, i32
  }
}

</mosaic_0001>

<llo_original>
// kernel: tpu_custom_call.1
$region0: #{tpu_custom_call.1}
  #allocation0 [shape = 'u32[]', space=smem, size = 0x4, offset = 0x4, fixed_abs, tag = 'smem constant byte address 0x4 - core index']
  #allocation1 [shape = 'u32[144,128]{1,0:T(1,128)}', space=vmem, size = 0x12000, scoped, tag = 'internal scratch']
  %s0 = inlined_call_operand.hbm [shape: bf16[2,8,128], index: 0, kind: input, shape index: {}]
  %s1 = inlined_call_operand.hbm [shape: bf16[128,1536], index: 1, kind: input, shape index: {}]
  %s2 = inlined_call_operand.hbm [shape: bf16[512,128], index: 2, kind: input, shape index: {}]
  %s3 = inlined_call_operand.vmem [shape: f32[1,128], index: 3, kind: input, shape index: {}]
  %s4 = inlined_call_operand.hbm [shape: f32[2,8,128], index: 4, kind: output, shape index: {}]
  %s5 = sld [smem:[#allocation0]]
  $region61: #{tpu_custom_call.1} parent=0
    _
  %s7 = ssub.s32 1, %s5
  %s8 = scalar_select 0, %s7, %s5
  $region1: #{tpu_custom_call.1} parent=0
    #allocation2 [shape = 'u8[4096]{0}', space=vmem, size = 0x1000, scoped, tag = 'input window, operand 0']
    #allocation3 [shape = 's32[2]{0}', space=sflag, size = 0x8, scoped, tag = 'scoped memory for tpu_custom_call.1']
    #allocation4 [shape = 's32[2]{0}', space=sflag, size = 0x8, scoped, tag = 'scoped memory for tpu_custom_call.1']
    #allocation5 [shape = 'u8[393216]{0}', space=vmem, size = 0x60000, scoped, tag = 'input window, operand 1, single buffered']
    #allocation6 [shape = 's32[1]{0}', space=sflag, size = 0x4, scoped, tag = 'scoped memory for tpu_custom_call.1']
    #allocation7 [shape = 'u8[131072]{0}', space=vmem, size = 0x20000, scoped, tag = 'input window, operand 2, single buffered']
    #allocation8 [shape = 'u8[8192]{0}', space=vmem, size = 0x2000, scoped, tag = 'output window, operand 0']
    %9 = vsyncpa [#allocation3], 0
    %s10 = scalar_lea.sflag [#allocation3], 1
    %11 = vsyncpa %s10, 0
    %12 = vsyncpa [#allocation6], 0
    %13 = vsyncpa [#allocation4], 0
    %s14 = scalar_lea.sflag [#allocation4], 1
    %15 = vsyncpa %s14, 0
    loop: start=0, step=1, limit=4
    $region2: #{tpu_custom_call.1} parent=1 // loop_pre_header
      _
    $region3: #{tpu_custom_call.1} parent=1 // loop_header
      %s17 = sphi 0, %s21
      %p18 = scmp.ge.s32.totalorder %s17, 4
      %s27 = sphi 0, %s29
      %s30 = sphi 0, %s27
      %s31 = sphi 0, %s30
      %s47 = sphi 0, %s31
      %s51 = sphi 0, %s51
      %s53 = sphi 0, %s51
      %s54 = sphi 0, %s53
      %s68 = sphi 0, %s54
      %s72 = sphi 0, %s72
      %s74 = sphi 0, %s72
      %s75 = sphi 0, %s74
      %s89 = sphi 0, %s75
      %s93 = sphi 0, %s93
      %s95 = sphi 0, %s93
      %s96 = sphi 0, %s95
      %s110 = sphi 0, %s96
      %s116 = sphi 0, %s118
      %s119 = sphi 0, %s116
      %s120 = sphi 0, %s119
      %s136 = sphi 0, %s120
    $region4: #{tpu_custom_call.1} parent=1 // loop_header_branch
      %20 = sbr.rel (%p18) target = $region8
    $region5: #{tpu_custom_call.1} parent=1 // loop_body
      %s22 = ssub.s32 %s17, 1
      %s23 = ssub.s32 %s17, 2
      %s24 = sadd.s32 %s17, 1
      %s25 = ssub.s32 %s17, %s24
      %p26 = scmp.eq.s32.totalorder %s25, 0
      %s28 = sadd.s32 %s27, 1
      %s29 = scalar_select %p26, %s27, %s28
      %p32 = pneg %p26
      %p33 = scmp.eq.s32.totalorder %s17, 1
      %p34 = por %p32, %p33
      %p35 = scmp.ne.s32.totalorder %s27, %s30
      %p36 = scmp.eq.s32.totalorder %s17, 0
      %p37 = por %p35, %p36
      %p38 = scmp.ne.s32.totalorder %s27, %s30
      %p39 = scmp.eq.s32.totalorder %s22, 1
      %p40 = por %p38, %p39
      %p41 = scmp.ne.s32.totalorder %s30, %s31
      %p42 = scmp.eq.s32.totalorder %s22, 0
      %p43 = por %p41, %p42
      %p44 = scmp.ne.s32.totalorder %s30, %s31
      %p45 = scmp.eq.s32.totalorder %s23, 1
      %p46 = por %p44, %p45
      %p48 = scmp.ne.s32.totalorder %s31, %s47
      %p49 = scmp.eq.s32.totalorder %s23, 0
      %p50 = por %p48, %p49
      %s52 = sadd.s32 %s51, 1
      %p55 = scmp.eq.s32.totalorder %s17, 1
      %p56 = scmp.ne.s32.totalorder %s51, %s53
      %p57 = scmp.eq.s32.totalorder %s17, 0
      %p58 = por %p56, %p57
      %p59 = scmp.ne.s32.totalorder %s51, %s53
      %p60 = scmp.eq.s32.totalorder %s22, 1
      %p61 = por %p59, %p60
      %p62 = scmp.ne.s32.totalorder %s53, %s54
      %p63 = scmp.eq.s32.totalorder %s22, 0
      %p64 = por %p62, %p63
      %p65 = scmp.ne.s32.totalorder %s53, %s54
      %p66 = scmp.eq.s32.totalorder %s23, 1
      %p67 = por %p65, %p66
      %p69 = scmp.ne.s32.totalorder %s54, %s68
      %p70 = scmp.eq.s32.totalorder %s23, 0
      %p71 = por %p69, %p70
      %s73 = sadd.s32 %s72, 1
      %p76 = scmp.eq.s32.totalorder %s17, 1
      %p77 = scmp.ne.s32.totalorder %s72, %s74
      %p78 = scmp.eq.s32.totalorder %s17, 0
      %p79 = por %p77, %p78
      %p80 = scmp.ne.s32.totalorder %s72, %s74
      %p81 = scmp.eq.s32.totalorder %s22, 1
      %p82 = por %p80, %p81
      %p83 = scmp.ne.s32.totalorder %s74, %s75
      %p84 = scmp.eq.s32.totalorder %s22, 0
      %p85 = por %p83, %p84
      %p86 = scmp.ne.s32.totalorder %s74, %s75
      %p87 = scmp.eq.s32.totalorder %s23, 1
      %p88 = por %p86, %p87
      %p90 = scmp.ne.s32.totalorder %s75, %s89
      %p91 = scmp.eq.s32.totalorder %s23, 0
      %p92 = por %p90, %p91
      %s94 = sadd.s32 %s93, 1
      %p97 = scmp.eq.s32.totalorder %s17, 1
      %p98 = scmp.ne.s32.totalorder %s93, %s95
      %p99 = scmp.eq.s32.totalorder %s17, 0
      %p100 = por %p98, %p99
      %p101 = scmp.ne.s32.totalorder %s93, %s95
      %p102 = scmp.eq.s32.totalorder %s22, 1
      %p103 = por %p101, %p102
      %p104 = scmp.ne.s32.totalorder %s95, %s96
      %p105 = scmp.eq.s32.totalorder %s22, 0
      %p106 = por %p104, %p105
      %p107 = scmp.ne.s32.totalorder %s95, %s96
      %p108 = scmp.eq.s32.totalorder %s23, 1
      %p109 = por %p107, %p108
      %p111 = scmp.ne.s32.totalorder %s96, %s110
      %p112 = scmp.eq.s32.totalorder %s23, 0
      %p113 = por %p111, %p112
      %s114 = ssub.s32 %s17, %s24
      %p115 = scmp.eq.s32.totalorder %s114, 0
      %s117 = sadd.s32 %s116, 1
      %s118 = scalar_select %p115, %s116, %s117
      %p121 = pneg %p115
      %p122 = scmp.eq.s32.totalorder %s17, 1
      %p123 = por %p121, %p122
      %p124 = scmp.ne.s32.totalorder %s116, %s119
      %p125 = scmp.eq.s32.totalorder %s17, 0
      %p126 = por %p124, %p125
      %p127 = scmp.ne.s32.totalorder %s116, %s119
      %p128 = scmp.eq.s32.totalorder %s22, 1
      %p129 = por %p127, %p128
      %p130 = scmp.ne.s32.totalorder %s119, %s120
      %p131 = scmp.eq.s32.totalorder %s22, 0
      %p132 = por %p130, %p131
      %p133 = scmp.ne.s32.totalorder %s119, %s120
      %p134 = scmp.eq.s32.totalorder %s23, 1
      %p135 = por %p133, %p134
      %p137 = scmp.ne.s32.totalorder %s120, %s136
      %p138 = scmp.eq.s32.totalorder %s23, 0
      %p139 = por %p137, %p138
      %p140 = scmp.le.s32.totalorder 1, %s17
      %p141 = scmp.lt.s32.totalorder %s17, 3
      %p142 = pnand %p140, %p141
      %p143 = pneg %p142
      // Predicated region
      $region9: #{tpu_custom_call.1} parent=5 // pred_check
        _
      $region10: #{tpu_custom_call.1} parent=5 // pred_check_branch
        %145 = sbr.rel (%p142) target = $region12
      $region11: #{tpu_custom_call.1} parent=5 // pred_region
        %s146 = ssub.s32 %s17, 1
        // Predicated region
        $region13: #{tpu_custom_call.1} parent=11 // pred_check
          %p147 = pneg %p64
        $region14: #{tpu_custom_call.1} parent=11 // pred_check_branch
          %149 = sbr.rel (%p147) target = $region16
        $region15: #{tpu_custom_call.1} parent=11 // pred_region
          %s151 = ssub.s32 12288, 12288
          %152 = vsyncadd [#allocation6], %s151
          %s153 = sshll.u32 [#allocation5], 4
          %s154 = int_to_ptr.vmem [resolvable:$true] %s153
          %159 = dma.hbm_to_vmem [thread:$0]  %s1, 12288, %s154, [#allocation6], 768, 768, 48
        $region16: #{tpu_custom_call.1} parent=11 // pred_fallthru
          _
        // Predicated region
        $region17: #{tpu_custom_call.1} parent=11 // pred_check
          %p160 = pneg %p85
        $region18: #{tpu_custom_call.1} parent=11 // pred_check_branch
          %162 = sbr.rel (%p160) target = $region20
        $region19: #{tpu_custom_call.1} parent=11 // pred_region
          %s164 = ssub.s32 4096, 4096
          %165 = vsyncadd [#allocation6], %s164
          %s166 = sshll.u32 [#allocation7], 4
          %s167 = int_to_ptr.vmem [resolvable:$true] %s166
          %172 = dma.hbm_to_vmem [thread:$0]  %s2, 4096, %s167, [#allocation6], 64, 64, 4
        $region20: #{tpu_custom_call.1} parent=11 // pred_fallthru
          _
        // Predicated region
        $region21: #{tpu_custom_call.1} parent=11 // pred_check
          %p173 = pneg %p106
        $region22: #{tpu_custom_call.1} parent=11 // pred_check_branch
          %175 = sbr.rel (%p173) target = $region24
        $region23: #{tpu_custom_call.1} parent=11 // pred_region
          _
        $region24: #{tpu_custom_call.1} parent=11 // pred_fallthru
          _
      $region12: #{tpu_custom_call.1} parent=5 // pred_fallthru
        _
      %p176 = scmp.lt.s32.totalorder %s17, 2
      // Predicated region
      $region25: #{tpu_custom_call.1} parent=5 // pred_check
        %p177 = pneg %p176
      $region26: #{tpu_custom_call.1} parent=5 // pred_check_branch
        %179 = sbr.rel (%p177) target = $region28
      $region27: #{tpu_custom_call.1} parent=5 // pred_region
        // Predicated region
        $region29: #{tpu_custom_call.1} parent=27 // pred_check
          %p180 = pneg %p37
        $region30: #{tpu_custom_call.1} parent=27 // pred_check_branch
          %182 = sbr.rel (%p180) target = $region32
        $region31: #{tpu_custom_call.1} parent=27 // pred_region
          %s183 = sand.u32 %s27, 1
          %s184 = scalar_lea.sflag [#allocation3], %s183
          %s185 = sand.u32 %s27, 1
          %s186 = smul.addr %s185, 4
          %s187 = scalar_lea.vmem [#allocation2], %s186
          %s189 = ssub.s32 64, 64
          %190 = vsyncadd %s184, %s189
          %s191 = smul.addr %s17, 64
          %s192 = scalar_lea.hbm %s0, %s191
          %s194 = sshll.u32 %s187, 4
          %s195 = int_to_ptr.vmem [resolvable:$true] %s194
          %197 = dma.hbm_to_vmem [thread:$0]  %s192, 64, %s195, %s184
        $region32: #{tpu_custom_call.1} parent=27 // pred_fallthru
          _
      $region28: #{tpu_custom_call.1} parent=5 // pred_fallthru
        _
      %p198 = scmp.le.s32.totalorder 1, %s17
      %p199 = scmp.lt.s32.totalorder %s17, 3
      %p200 = pnand %p198, %p199
      %p201 = pneg %p200
      // Predicated region
      $region33: #{tpu_custom_call.1} parent=5 // pred_check
        _
      $region34: #{tpu_custom_call.1} parent=5 // pred_check_branch
        %203 = sbr.rel (%p200) target = $region36
      $region35: #{tpu_custom_call.1} parent=5 // pred_region
        %s204 = ssub.s32 %s17, 1
        %s205 = sand.u32 %s30, 1
        %s206 = scalar_lea.sflag [#allocation3], %s205
        %s207 = sand.u32 %s30, 1
        %s208 = smul.addr %s207, 4
        %s209 = scalar_lea.vmem [#allocation2], %s208
        // Predicated region
        $region37: #{tpu_custom_call.1} parent=35 // pred_check
          %p210 = pneg %p43
        $region38: #{tpu_custom_call.1} parent=35 // pred_check_branch
          %212 = sbr.rel (%p210) target = $region40
        $region39: #{tpu_custom_call.1} parent=35 // pred_region
          %213 = dma.done %s206, 64
        $region40: #{tpu_custom_call.1} parent=35 // pred_fallthru
          _
        // Predicated region
        $region41: #{tpu_custom_call.1} parent=35 // pred_check
          %p214 = pneg %p64
        $region42: #{tpu_custom_call.1} parent=35 // pred_check_branch
          %216 = sbr.rel (%p214) target = $region44
        $region43: #{tpu_custom_call.1} parent=35 // pred_region
          %217 = dma.done [#allocation6], 12288
        $region44: #{tpu_custom_call.1} parent=35 // pred_fallthru
          _
        // Predicated region
        $region45: #{tpu_custom_call.1} parent=35 // pred_check
          %p218 = pneg %p85
        $region46: #{tpu_custom_call.1} parent=35 // pred_check_branch
          %220 = sbr.rel (%p218) target = $region48
        $region47: #{tpu_custom_call.1} parent=35 // pred_region
          %221 = dma.done [#allocation6], 4096
        $region48: #{tpu_custom_call.1} parent=35 // pred_fallthru
          _
        %s222 = sand.u32 %s30, 1
        %s223 = scalar_lea.sflag [#allocation3], %s222
        %s224 = sand.u32 %s30, 1
        %s225 = smul.addr %s224, 4
        %s226 = scalar_lea.vmem [#allocation2], %s225
        %p227 = pneg %p43
        %p228 = pneg %p40
        %p229 = pneg %p64
        %p230 = pneg %p61
        %p231 = pneg %p85
        %p232 = pneg %p82
        %p233 = pneg %p106
        %p234 = pneg %p103
        %p235 = pneg %p132
        %p236 = pneg %p129
        %s237 = sand.u32 %s119, 1
        %s238 = scalar_lea.sflag [#allocation4], %s237
        %s239 = sand.u32 %s119, 1
        %s240 = smul.addr %s239, 8
        %s241 = scalar_lea.vmem [#allocation8], %s240
        %v243 = vld [vmem:[%s209] sm:$0xf]
        %v244 = vld [vmem:[#allocation5] sm:$0xff]
        %v245 = vld [vmem:[#allocation5 + $0x8] sm:$0xff]
        %v246 = vld [vmem:[#allocation5 + $0x10] sm:$0xff]
        %v247 = vld [vmem:[#allocation5 + $0x18] sm:$0xff]
        %v248 = vld [vmem:[#allocation5 + $0x20] sm:$0xff]
        %v249 = vld [vmem:[#allocation5 + $0x28] sm:$0xff]
        %v250 = vld [vmem:[#allocation5 + $0x30] sm:$0xff]
        %v251 = vld [vmem:[#allocation5 + $0x38] sm:$0xff]
        %v252 = vld [vmem:[#allocation5 + $0x40] sm:$0xff]
        %v253 = vld [vmem:[#allocation5 + $0x48] sm:$0xff]
        %v254 = vld [vmem:[#allocation5 + $0x50] sm:$0xff]
        %v255 = vld [vmem:[#allocation5 + $0x58] sm:$0xff]
        %v256 = vld [vmem:[#allocation5 + $0x60] sm:$0xff]
        %v257 = vld [vmem:[#allocation5 + $0x68] sm:$0xff]
        %v258 = vld [vmem:[#allocation5 + $0x70] sm:$0xff]
        %v259 = vld [vmem:[#allocation5 + $0x78] sm:$0xff]
        %v260 = vld [vmem:[#allocation5 + $0x80] sm:$0xff]
        %v261 = vld [vmem:[#allocation5 + $0x88] sm:$0xff]
        %v262 = vld [vmem:[#allocation5 + $0x90] sm:$0xff]
        %v263 = vld [vmem:[#allocation5 + $0x98] sm:$0xff]
        %v264 = vld [vmem:[#allocation5 + $0xa0] sm:$0xff]
        %v265 = vld [vmem:[#allocation5 + $0xa8] sm:$0xff]
        %v266 = vld [vmem:[#allocation5 + $0xb0] sm:$0xff]
        %v267 = vld [vmem:[#allocation5 + $0xb8] sm:$0xff]
        %v268 = vld [vmem:[#allocation5 + $0xc0] sm:$0xff]
        %v269 = vld [vmem:[#allocation5 + $0xc8] sm:$0xff]
        %v270 = vld [vmem:[#allocation5 + $0xd0] sm:$0xff]
        %v271 = vld [vmem:[#allocation5 + $0xd8] sm:$0xff]
        %v272 = vld [vmem:[#allocation5 + $0xe0] sm:$0xff]
        %v273 = vld [vmem:[#allocation5 + $0xe8] sm:$0xff]
        %v274 = vld [vmem:[#allocation5 + $0xf0] sm:$0xff]
        %v275 = vld [vmem:[#allocation5 + $0xf8] sm:$0xff]
        %v276 = vld [vmem:[#allocation5 + $0x100] sm:$0xff]
        %v277 = vld [vmem:[#allocation5 + $0x108] sm:$0xff]
        %v278 = vld [vmem:[#allocation5 + $0x110] sm:$0xff]
        %v279 = vld [vmem:[#allocation5 + $0x118] sm:$0xff]
        %v280 = vld [vmem:[#allocation5 + $0x120] sm:$0xff]
        %v281 = vld [vmem:[#allocation5 + $0x128] sm:$0xff]
        %v282 = vld [vmem:[#allocation5 + $0x130] sm:$0xff]
        %v283 = vld [vmem:[#allocation5 + $0x138] sm:$0xff]
        %v284 = vld [vmem:[#allocation5 + $0x140] sm:$0xff]
        %v285 = vld [vmem:[#allocation5 + $0x148] sm:$0xff]
        %v286 = vld [vmem:[#allocation5 + $0x150] sm:$0xff]
        %v287 = vld [vmem:[#allocation5 + $0x158] sm:$0xff]
        %v288 = vld [vmem:[#allocation5 + $0x160] sm:$0xff]
        %v289 = vld [vmem:[#allocation5 + $0x168] sm:$0xff]
        %v290 = vld [vmem:[#allocation5 + $0x170] sm:$0xff]
        %v291 = vld [vmem:[#allocation5 + $0x178] sm:$0xff]
        %v292 = vld [vmem:[#allocation5 + $0x180] sm:$0xff]
        %v293 = vld [vmem:[#allocation5 + $0x188] sm:$0xff]
        %v294 = vld [vmem:[#allocation5 + $0x190] sm:$0xff]
        %v295 = vld [vmem:[#allocation5 + $0x198] sm:$0xff]
        %v296 = vld [vmem:[#allocation5 + $0x1a0] sm:$0xff]
        %v297 = vld [vmem:[#allocation5 + $0x1a8] sm:$0xff]
        %v298 = vld [vmem:[#allocation5 + $0x1b0] sm:$0xff]
        %v299 = vld [vmem:[#allocation5 + $0x1b8] sm:$0xff]
        %v300 = vld [vmem:[#allocation5 + $0x1c0] sm:$0xff]
        %v301 = vld [vmem:[#allocation5 + $0x1c8] sm:$0xff]
        %v302 = vld [vmem:[#allocation5 + $0x1d0] sm:$0xff]
        %v303 = vld [vmem:[#allocation5 + $0x1d8] sm:$0xff]
        %v304 = vld [vmem:[#allocation5 + $0x1e0] sm:$0xff]
        %v305 = vld [vmem:[#allocation5 + $0x1e8] sm:$0xff]
        %v306 = vld [vmem:[#allocation5 + $0x1f0] sm:$0xff]
        %v307 = vld [vmem:[#allocation5 + $0x1f8] sm:$0xff]
        %v308 = vld [vmem:[#allocation5 + $0x200] sm:$0xff]
        %v309 = vld [vmem:[#allocation5 + $0x208] sm:$0xff]
        %v310 = vld [vmem:[#allocation5 + $0x210] sm:$0xff]
        %v311 = vld [vmem:[#allocation5 + $0x218] sm:$0xff]
        %v312 = vld [vmem:[#allocation5 + $0x220] sm:$0xff]
        %v313 = vld [vmem:[#allocation5 + $0x228] sm:$0xff]
        %v314 = vld [vmem:[#allocation5 + $0x230] sm:$0xff]
        %v315 = vld [vmem:[#allocation5 + $0x238] sm:$0xff]
        %v316 = vld [vmem:[#allocation5 + $0x240] sm:$0xff]
        %v317 = vld [vmem:[#allocation5 + $0x248] sm:$0xff]
        %v318 = vld [vmem:[#allocation5 + $0x250] sm:$0xff]
        %v319 = vld [vmem:[#allocation5 + $0x258] sm:$0xff]
        %v320 = vld [vmem:[#allocation5 + $0x260] sm:$0xff]
        %v321 = vld [vmem:[#allocation5 + $0x268] sm:$0xff]
        %v322 = vld [vmem:[#allocation5 + $0x270] sm:$0xff]
        %v323 = vld [vmem:[#allocation5 + $0x278] sm:$0xff]
        %v324 = vld [vmem:[#allocation5 + $0x280] sm:$0xff]
        %v325 = vld [vmem:[#allocation5 + $0x288] sm:$0xff]
        %v326 = vld [vmem:[#allocation5 + $0x290] sm:$0xff]
        %v327 = vld [vmem:[#allocation5 + $0x298] sm:$0xff]
        %v328 = vld [vmem:[#allocation5 + $0x2a0] sm:$0xff]
        %v329 = vld [vmem:[#allocation5 + $0x2a8] sm:$0xff]
        %v330 = vld [vmem:[#allocation5 + $0x2b0] sm:$0xff]
        %v331 = vld [vmem:[#allocation5 + $0x2b8] sm:$0xff]
        %v332 = vld [vmem:[#allocation5 + $0x2c0] sm:$0xff]
        %v333 = vld [vmem:[#allocation5 + $0x2c8] sm:$0xff]
        %v334 = vld [vmem:[#allocation5 + $0x2d0] sm:$0xff]
        %v335 = vld [vmem:[#allocation5 + $0x2d8] sm:$0xff]
        %v336 = vld [vmem:[#allocation5 + $0x2e0] sm:$0xff]
        %v337 = vld [vmem:[#allocation5 + $0x2e8] sm:$0xff]
        %v338 = vld [vmem:[#allocation5 + $0x2f0] sm:$0xff]
        %v339 = vld [vmem:[#allocation5 + $0x2f8] sm:$0xff]
        %v436 = vunpack.c.l.b16 %v244
        %v437 = vunpack.c.h.b16 %v244
        %v438 = vunpack.c.l.b16 %v245
        %v439 = vunpack.c.h.b16 %v245
        %v440 = vunpack.c.l.b16 %v246
        %v441 = vunpack.c.h.b16 %v246
        %v442 = vunpack.c.l.b16 %v247
        %v443 = vunpack.c.h.b16 %v247
        %v444 = vunpack.c.l.b16 %v248
        %v445 = vunpack.c.h.b16 %v248
        %v446 = vunpack.c.l.b16 %v249
        %v447 = vunpack.c.h.b16 %v249
        %v448 = vunpack.c.l.b16 %v250
        %v449 = vunpack.c.h.b16 %v250
        %v450 = vunpack.c.l.b16 %v251
        %v451 = vunpack.c.h.b16 %v251
        %v452 = vunpack.c.l.b16 %v252
        %v453 = vunpack.c.h.b16 %v252
        %v454 = vunpack.c.l.b16 %v253
        %v455 = vunpack.c.h.b16 %v253
        %v456 = vunpack.c.l.b16 %v254
        %v457 = vunpack.c.h.b16 %v254
        %v458 = vunpack.c.l.b16 %v255
        %v459 = vunpack.c.h.b16 %v255
        %v460 = vunpack.c.l.b16 %v256
        %v461 = vunpack.c.h.b16 %v256
        %v462 = vunpack.c.l.b16 %v257
        %v463 = vunpack.c.h.b16 %v257
        %v464 = vunpack.c.l.b16 %v258
        %v465 = vunpack.c.h.b16 %v258
        %v466 = vunpack.c.l.b16 %v259
        %v467 = vunpack.c.h.b16 %v259
        %v468 = vunpack.c.l.b16 %v260
        %v469 = vunpack.c.h.b16 %v260
        %v470 = vunpack.c.l.b16 %v261
        %v471 = vunpack.c.h.b16 %v261
        %v472 = vunpack.c.l.b16 %v262
        %v473 = vunpack.c.h.b16 %v262
        %v474 = vunpack.c.l.b16 %v263
        %v475 = vunpack.c.h.b16 %v263
        %v476 = vunpack.c.l.b16 %v264
        %v477 = vunpack.c.h.b16 %v264
        %v478 = vunpack.c.l.b16 %v265
        %v479 = vunpack.c.h.b16 %v265
        %v480 = vunpack.c.l.b16 %v266
        %v481 = vunpack.c.h.b16 %v266
        %v482 = vunpack.c.l.b16 %v267
        %v483 = vunpack.c.h.b16 %v267
        %v484 = vunpack.c.l.b16 %v268
        %v485 = vunpack.c.h.b16 %v268
        %v486 = vunpack.c.l.b16 %v269
        %v487 = vunpack.c.h.b16 %v269
        %v488 = vunpack.c.l.b16 %v270
        %v489 = vunpack.c.h.b16 %v270
        %v490 = vunpack.c.l.b16 %v271
        %v491 = vunpack.c.h.b16 %v271
        %v492 = vunpack.c.l.b16 %v272
        %v493 = vunpack.c.h.b16 %v272
        %v494 = vunpack.c.l.b16 %v273
        %v495 = vunpack.c.h.b16 %v273
        %v496 = vunpack.c.l.b16 %v274
        %v497 = vunpack.c.h.b16 %v274
        %v498 = vunpack.c.l.b16 %v275
        %v499 = vunpack.c.h.b16 %v275
        %v500 = vunpack.c.l.b16 %v276
        %v501 = vunpack.c.h.b16 %v276
        %v502 = vunpack.c.l.b16 %v277
        %v503 = vunpack.c.h.b16 %v277
        %v504 = vunpack.c.l.b16 %v278
        %v505 = vunpack.c.h.b16 %v278
        %v506 = vunpack.c.l.b16 %v279
        %v507 = vunpack.c.h.b16 %v279
        %v508 = vunpack.c.l.b16 %v280
        %v509 = vunpack.c.h.b16 %v280
        %v510 = vunpack.c.l.b16 %v281
        %v511 = vunpack.c.h.b16 %v281
        %v512 = vunpack.c.l.b16 %v282
        %v513 = vunpack.c.h.b16 %v282
        %v514 = vunpack.c.l.b16 %v283
        %v515 = vunpack.c.h.b16 %v283
        %v516 = vunpack.c.l.b16 %v284
        %v517 = vunpack.c.h.b16 %v284
        %v518 = vunpack.c.l.b16 %v285
        %v519 = vunpack.c.h.b16 %v285
        %v520 = vunpack.c.l.b16 %v286
        %v521 = vunpack.c.h.b16 %v286
        %v522 = vunpack.c.l.b16 %v287
        %v523 = vunpack.c.h.b16 %v287
        %v524 = vunpack.c.l.b16 %v288
        %v525 = vunpack.c.h.b16 %v288
        %v526 = vunpack.c.l.b16 %v289
        %v527 = vunpack.c.h.b16 %v289
        %v528 = vunpack.c.l.b16 %v290
        %v529 = vunpack.c.h.b16 %v290
        %v530 = vunpack.c.l.b16 %v291
        %v531 = vunpack.c.h.b16 %v291
        %v532 = vunpack.c.l.b16 %v292
        %v533 = vunpack.c.h.b16 %v292
        %v534 = vunpack.c.l.b16 %v293
        %v535 = vunpack.c.h.b16 %v293
        %v536 = vunpack.c.l.b16 %v294
        %v537 = vunpack.c.h.b16 %v294
        %v538 = vunpack.c.l.b16 %v295
        %v539 = vunpack.c.h.b16 %v295
        %v540 = vunpack.c.l.b16 %v296
        %v541 = vunpack.c.h.b16 %v296
        %v542 = vunpack.c.l.b16 %v297
        %v543 = vunpack.c.h.b16 %v297
        %v544 = vunpack.c.l.b16 %v298
        %v545 = vunpack.c.h.b16 %v298
        %v546 = vunpack.c.l.b16 %v299
        %v547 = vunpack.c.h.b16 %v299
        %v548 = vunpack.c.l.b16 %v300
        %v549 = vunpack.c.h.b16 %v300
        %v550 = vunpack.c.l.b16 %v301
        %v551 = vunpack.c.h.b16 %v301
        %v552 = vunpack.c.l.b16 %v302
        %v553 = vunpack.c.h.b16 %v302
        %v554 = vunpack.c.l.b16 %v303
        %v555 = vunpack.c.h.b16 %v303
        %v556 = vunpack.c.l.b16 %v304
        %v557 = vunpack.c.h.b16 %v304
        %v558 = vunpack.c.l.b16 %v305
        %v559 = vunpack.c.h.b16 %v305
        %v560 = vunpack.c.l.b16 %v306
        %v561 = vunpack.c.h.b16 %v306
        %v562 = vunpack.c.l.b16 %v307
        %v563 = vunpack.c.h.b16 %v307
        %v564 = vunpack.c.l.b16 %v308
        %v565 = vunpack.c.h.b16 %v308
        %v566 = vunpack.c.l.b16 %v309
        %v567 = vunpack.c.h.b16 %v309
        %v568 = vunpack.c.l.b16 %v310
        %v569 = vunpack.c.h.b16 %v310
        %v570 = vunpack.c.l.b16 %v311
        %v571 = vunpack.c.h.b16 %v311
        %v572 = vunpack.c.l.b16 %v312
        %v573 = vunpack.c.h.b16 %v312
        %v574 = vunpack.c.l.b16 %v313
        %v575 = vunpack.c.h.b16 %v313
        %v576 = vunpack.c.l.b16 %v314
        %v577 = vunpack.c.h.b16 %v314
        %v578 = vunpack.c.l.b16 %v315
        %v579 = vunpack.c.h.b16 %v315
        %v580 = vunpack.c.l.b16 %v316
        %v581 = vunpack.c.h.b16 %v316
        %v582 = vunpack.c.l.b16 %v317
        %v583 = vunpack.c.h.b16 %v317
        %v584 = vunpack.c.l.b16 %v318
        %v585 = vunpack.c.h.b16 %v318
        %v586 = vunpack.c.l.b16 %v319
        %v587 = vunpack.c.h.b16 %v319
        %v588 = vunpack.c.l.b16 %v320
        %v589 = vunpack.c.h.b16 %v320
        %v590 = vunpack.c.l.b16 %v321
        %v591 = vunpack.c.h.b16 %v321
        %v592 = vunpack.c.l.b16 %v322
        %v593 = vunpack.c.h.b16 %v322
        %v594 = vunpack.c.l.b16 %v323
        %v595 = vunpack.c.h.b16 %v323
        %v596 = vunpack.c.l.b16 %v324
        %v597 = vunpack.c.h.b16 %v324
        %v598 = vunpack.c.l.b16 %v325
        %v599 = vunpack.c.h.b16 %v325
        %v600 = vunpack.c.l.b16 %v326
        %v601 = vunpack.c.h.b16 %v326
        %v602 = vunpack.c.l.b16 %v327
        %v603 = vunpack.c.h.b16 %v327
        %v604 = vunpack.c.l.b16 %v328
        %v605 = vunpack.c.h.b16 %v328
        %v606 = vunpack.c.l.b16 %v329
        %v607 = vunpack.c.h.b16 %v329
        %v608 = vunpack.c.l.b16 %v330
        %v609 = vunpack.c.h.b16 %v330
        %v610 = vunpack.c.l.b16 %v331
        %v611 = vunpack.c.h.b16 %v331
        %v612 = vunpack.c.l.b16 %v332
        %v613 = vunpack.c.h.b16 %v332
        %v614 = vunpack.c.l.b16 %v333
        %v615 = vunpack.c.h.b16 %v333
        %v616 = vunpack.c.l.b16 %v334
        %v617 = vunpack.c.h.b16 %v334
        %v618 = vunpack.c.l.b16 %v335
        %v619 = vunpack.c.h.b16 %v335
        %v620 = vunpack.c.l.b16 %v336
        %v621 = vunpack.c.h.b16 %v336
        %v622 = vunpack.c.l.b16 %v337
        %v623 = vunpack.c.h.b16 %v337
        %v624 = vunpack.c.l.b16 %v338
        %v625 = vunpack.c.h.b16 %v338
        %v626 = vunpack.c.l.b16 %v339
        %v627 = vunpack.c.h.b16 %v339
        %v628 = vpack.c.b16 %v448, %v436
        %v629 = vpack.c.b16 %v449, %v437
        %v630 = vpack.c.b16 %v450, %v438
        %v631 = vpack.c.b16 %v451, %v439
        %v632 = vpack.c.b16 %v452, %v440
        %v633 = vpack.c.b16 %v453, %v441
        %v634 = vpack.c.b16 %v454, %v442
        %v635 = vpack.c.b16 %v455, %v443
        %v636 = vpack.c.b16 %v456, %v444
        %v637 = vpack.c.b16 %v457, %v445
        %v638 = vpack.c.b16 %v458, %v446
        %v639 = vpack.c.b16 %v459, %v447
        %v640 = vpack.c.b16 %v472, %v460
        %v641 = vpack.c.b16 %v473, %v461
        %v642 = vpack.c.b16 %v474, %v462
        %v643 = vpack.c.b16 %v475, %v463
        %v644 = vpack.c.b16 %v476, %v464
        %v645 = vpack.c.b16 %v477, %v465
        %v646 = vpack.c.b16 %v478, %v466
        %v647 = vpack.c.b16 %v479, %v467
        %v648 = vpack.c.b16 %v480, %v468
        %v649 = vpack.c.b16 %v481, %v469
        %v650 = vpack.c.b16 %v482, %v470
        %v651 = vpack.c.b16 %v483, %v471
        %v652 = vpack.c.b16 %v496, %v484
        %v653 = vpack.c.b16 %v497, %v485
        %v654 = vpack.c.b16 %v498, %v486
        %v655 = vpack.c.b16 %v499, %v487
        %v656 = vpack.c.b16 %v500, %v488
        %v657 = vpack.c.b16 %v501, %v489
        %v658 = vpack.c.b16 %v502, %v490
        %v659 = vpack.c.b16 %v503, %v491
        %v660 = vpack.c.b16 %v504, %v492
        %v661 = vpack.c.b16 %v505, %v493
        %v662 = vpack.c.b16 %v506, %v494
        %v663 = vpack.c.b16 %v507, %v495
        %v664 = vpack.c.b16 %v520, %v508
        %v665 = vpack.c.b16 %v521, %v509
        %v666 = vpack.c.b16 %v522, %v510
        %v667 = vpack.c.b16 %v523, %v511
        %v668 = vpack.c.b16 %v524, %v512
        %v669 = vpack.c.b16 %v525, %v513
        %v670 = vpack.c.b16 %v526, %v514
        %v671 = vpack.c.b16 %v527, %v515
        %v672 = vpack.c.b16 %v528, %v516
        %v673 = vpack.c.b16 %v529, %v517
        %v674 = vpack.c.b16 %v530, %v518
        %v675 = vpack.c.b16 %v531, %v519
        %v676 = vpack.c.b16 %v544, %v532
        %v677 = vpack.c.b16 %v545, %v533
        %v678 = vpack.c.b16 %v546, %v534
        %v679 = vpack.c.b16 %v547, %v535
        %v680 = vpack.c.b16 %v548, %v536
        %v681 = vpack.c.b16 %v549, %v537
        %v682 = vpack.c.b16 %v550, %v538
        %v683 = vpack.c.b16 %v551, %v539
        %v684 = vpack.c.b16 %v552, %v540
        %v685 = vpack.c.b16 %v553, %v541
        %v686 = vpack.c.b16 %v554, %v542
        %v687 = vpack.c.b16 %v555, %v543
        %v688 = vpack.c.b16 %v568, %v556
        %v689 = vpack.c.b16 %v569, %v557
        %v690 = vpack.c.b16 %v570, %v558
        %v691 = vpack.c.b16 %v571, %v559
        %v692 = vpack.c.b16 %v572, %v560
        %v693 = vpack.c.b16 %v573, %v561
        %v694 = vpack.c.b16 %v574, %v562
        %v695 = vpack.c.b16 %v575, %v563
        %v696 = vpack.c.b16 %v576, %v564
        %v697 = vpack.c.b16 %v577, %v565
        %v698 = vpack.c.b16 %v578, %v566
        %v699 = vpack.c.b16 %v579, %v567
        %v700 = vpack.c.b16 %v592, %v580
        %v701 = vpack.c.b16 %v593, %v581
        %v702 = vpack.c.b16 %v594, %v582
        %v703 = vpack.c.b16 %v595, %v583
        %v704 = vpack.c.b16 %v596, %v584
        %v705 = vpack.c.b16 %v597, %v585
        %v706 = vpack.c.b16 %v598, %v586
        %v707 = vpack.c.b16 %v599, %v587
        %v708 = vpack.c.b16 %v600, %v588
        %v709 = vpack.c.b16 %v601, %v589
        %v710 = vpack.c.b16 %v602, %v590
        %v711 = vpack.c.b16 %v603, %v591
        %v712 = vpack.c.b16 %v616, %v604
        %v713 = vpack.c.b16 %v617, %v605
        %v714 = vpack.c.b16 %v618, %v606
        %v715 = vpack.c.b16 %v619, %v607
        %v716 = vpack.c.b16 %v620, %v608
        %v717 = vpack.c.b16 %v621, %v609
        %v718 = vpack.c.b16 %v622, %v610
        %v719 = vpack.c.b16 %v623, %v611
        %v720 = vpack.c.b16 %v624, %v612
        %v721 = vpack.c.b16 %v625, %v613
        %v722 = vpack.c.b16 %v626, %v614
        %v723 = vpack.c.b16 %v627, %v615
        %820 = vmatprep.subr.bf16.mxu0 %v629
        %821 = vmatpush1.bf16.msra.mxu0 %v628
        %822 = vmatprep.subr.bf16.mxu0 %v641
        %823 = vmatpush1.bf16.msra.mxu0 %v640
        %824 = vmatprep.subr.bf16.mxu0 %v653
        %825 = vmatpush1.bf16.msra.mxu0 %v652
        %826 = vmatprep.subr.bf16.mxu0 %v665
        %827 = vmatpush1.bf16.msra.mxu0 %v664
        %828 = vmatprep.subr.bf16.mxu0 %v677
        %829 = vmatpush1.bf16.msra.mxu0 %v676
        %830 = vmatprep.subr.bf16.mxu0 %v689
        %831 = vmatpush1.bf16.msra.mxu0 %v688
        %832 = vmatprep.subr.bf16.mxu0 %v701
        %833 = vmatpush1.bf16.msra.mxu0 %v700
        %834 = vmatprep.subr.bf16.mxu0 %v713
        %835 = vmatpush1.bf16.msra.mxu0 %v712
        %836 = vmatprep.subr.bf16.mxu0 0
        %837 = vmatpush1.bf16.msra.mxu0 0
        %838 = vmatprep.subr.bf16.mxu0 0
        %839 = vmatpush1.bf16.msra.mxu0 0
        %840 = vmatprep.subr.bf16.mxu0 0
        %841 = vmatpush1.bf16.msra.mxu0 0
        %842 = vmatprep.subr.bf16.mxu0 0
        %843 = vmatpush1.bf16.msra.mxu0 0
        %844 = vmatprep.subr.bf16.mxu0 0
        %845 = vmatpush1.bf16.msra.mxu0 0
        %846 = vmatprep.subr.bf16.mxu0 0
        %847 = vmatpush1.bf16.msra.mxu0 0
        %848 = vmatprep.subr.bf16.mxu0 0
        %849 = vmatpush1.bf16.msra.mxu0 0
        %850 = vmatprep.subr.bf16.mxu0 0
        %851 = vmatpush1.bf16.msra.mxu0 0
        %852 = vmatprep.mubr.bf16.mxu0 0
        %853 = vmatmul.mubr.bf16.gmra.mrb[0].mxu0 %v243
        %v854 = vpop.f32.mrb[0].mxu0
        %v855 = vadd.f32 0.0, %v854
        %v856 = vpop.f32.mrb[0].mxu0
        %v857 = vadd.f32 0.0, %v856
        %v858 = vpop.f32.mrb[0].mxu0
        %v859 = vpop.f32.mrb[0].mxu0
        %860 = vdwg.mxu0
        %861 = vmatprep.subr.bf16.mxu0 %v631
        %862 = vmatpush1.bf16.msra.mxu0 %v630
        %863 = vmatprep.subr.bf16.mxu0 %v643
        %864 = vmatpush1.bf16.msra.mxu0 %v642
        %865 = vmatprep.subr.bf16.mxu0 %v655
        %866 = vmatpush1.bf16.msra.mxu0 %v654
        %867 = vmatprep.subr.bf16.mxu0 %v667
        %868 = vmatpush1.bf16.msra.mxu0 %v666
        %869 = vmatprep.subr.bf16.mxu0 %v679
        %870 = vmatpush1.bf16.msra.mxu0 %v678
        %871 = vmatprep.subr.bf16.mxu0 %v691
        %872 = vmatpush1.bf16.msra.mxu0 %v690
        %873 = vmatprep.subr.bf16.mxu0 %v703
        %874 = vmatpush1.bf16.msra.mxu0 %v702
        %875 = vmatprep.subr.bf16.mxu0 %v715
        %876 = vmatpush1.bf16.msra.mxu0 %v714
        %877 = vmatprep.subr.bf16.mxu0 0
        %878 = vmatpush1.bf16.msra.mxu0 0
        %879 = vmatprep.subr.bf16.mxu0 0
        %880 = vmatpush1.bf16.msra.mxu0 0
        %881 = vmatprep.subr.bf16.mxu0 0
        %882 = vmatpush1.bf16.msra.mxu0 0
        %883 = vmatprep.subr.bf16.mxu0 0
        %884 = vmatpush1.bf16.msra.mxu0 0
        %885 = vmatprep.subr.bf16.mxu0 0
        %886 = vmatpush1.bf16.msra.mxu0 0
        %887 = vmatprep.subr.bf16.mxu0 0
        %888 = vmatpush1.bf16.msra.mxu0 0
        %889 = vmatprep.subr.bf16.mxu0 0
        %890 = vmatpush1.bf16.msra.mxu0 0
        %891 = vmatprep.subr.bf16.mxu0 0
        %892 = vmatpush1.bf16.msra.mxu0 0
        %893 = vmatprep.mubr.bf16.mxu0 0
        %894 = vmatmul.mubr.bf16.gmra.mrb[0].mxu0 %v243
        %v895 = vpop.f32.mrb[0].mxu0
        %v896 = vadd.f32 0.0, %v895
        %v897 = vpop.f32.mrb[0].mxu0
        %v898 = vadd.f32 0.0, %v897
        %v899 = vpop.f32.mrb[0].mxu0
        %v900 = vpop.f32.mrb[0].mxu0
        %901 = vdwg.mxu0
        %902 = vmatprep.subr.bf16.mxu0 %v633
        %903 = vmatpush1.bf16.msra.mxu0 %v632
        %904 = vmatprep.subr.bf16.mxu0 %v645
        %905 = vmatpush1.bf16.msra.mxu0 %v644
        %906 = vmatprep.subr.bf16.mxu0 %v657
        %907 = vmatpush1.bf16.msra.mxu0 %v656
        %908 = vmatprep.subr.bf16.mxu0 %v669
        %909 = vmatpush1.bf16.msra.mxu0 %v668
        %910 = vmatprep.subr.bf16.mxu0 %v681
        %911 = vmatpush1.bf16.msra.mxu0 %v680
        %912 = vmatprep.subr.bf16.mxu0 %v693
        %913 = vmatpush1.bf16.msra.mxu0 %v692
        %914 = vmatprep.subr.bf16.mxu0 %v705
        %915 = vmatpush1.bf16.msra.mxu0 %v704
        %916 = vmatprep.subr.bf16.mxu0 %v717
        %917 = vmatpush1.bf16.msra.mxu0 %v716
        %918 = vmatprep.subr.bf16.mxu0 0
        %919 = vmatpush1.bf16.msra.mxu0 0
        %920 = vmatprep.subr.bf16.mxu0 0
        %921 = vmatpush1.bf16.msra.mxu0 0
        %922 = vmatprep.subr.bf16.mxu0 0
        %923 = vmatpush1.bf16.msra.mxu0 0
        %924 = vmatprep.subr.bf16.mxu0 0
        %925 = vmatpush1.bf16.msra.mxu0 0
        %926 = vmatprep.subr.bf16.mxu0 0
        %927 = vmatpush1.bf16.msra.mxu0 0
        %928 = vmatprep.subr.bf16.mxu0 0
        %929 = vmatpush1.bf16.msra.mxu0 0
        %930 = vmatprep.subr.bf16.mxu0 0
        %931 = vmatpush1.bf16.msra.mxu0 0
        %932 = vmatprep.subr.bf16.mxu0 0
        %933 = vmatpush1.bf16.msra.mxu0 0
        %934 = vmatprep.mubr.bf16.mxu0 0
        %935 = vmatmul.mubr.bf16.gmra.mrb[0].mxu0 %v243
        %v936 = vpop.f32.mrb[0].mxu0
        %v937 = vadd.f32 0.0, %v936
        %v938 = vpop.f32.mrb[0].mxu0
        %v939 = vadd.f32 0.0, %v938
        %v940 = vpop.f32.mrb[0].mxu0
        %v941 = vpop.f32.mrb[0].mxu0
        %942 = vdwg.mxu0
        %943 = vmatprep.subr.bf16.mxu0 %v635
        %944 = vmatpush1.bf16.msra.mxu0 %v634
        %945 = vmatprep.subr.bf16.mxu0 %v647
        %946 = vmatpush1.bf16.msra.mxu0 %v646
        %947 = vmatprep.subr.bf16.mxu0 %v659
        %948 = vmatpush1.bf16.msra.mxu0 %v658
        %949 = vmatprep.subr.bf16.mxu0 %v671
        %950 = vmatpush1.bf16.msra.mxu0 %v670
        %951 = vmatprep.subr.bf16.mxu0 %v683
        %952 = vmatpush1.bf16.msra.mxu0 %v682
        %953 = vmatprep.subr.bf16.mxu0 %v695
        %954 = vmatpush1.bf16.msra.mxu0 %v694
        %955 = vmatprep.subr.bf16.mxu0 %v707
        %956 = vmatpush1.bf16.msra.mxu0 %v706
        %957 = vmatprep.subr.bf16.mxu0 %v719
        %958 = vmatpush1.bf16.msra.mxu0 %v718
        %959 = vmatprep.subr.bf16.mxu0 0
        %960 = vmatpush1.bf16.msra.mxu0 0
        %961 = vmatprep.subr.bf16.mxu0 0
        %962 = vmatpush1.bf16.msra.mxu0 0
        %963 = vmatprep.subr.bf16.mxu0 0
        %964 = vmatpush1.bf16.msra.mxu0 0
        %965 = vmatprep.subr.bf16.mxu0 0
        %966 = vmatpush1.bf16.msra.mxu0 0
        %967 = vmatprep.subr.bf16.mxu0 0
        %968 = vmatpush1.bf16.msra.mxu0 0
        %969 = vmatprep.subr.bf16.mxu0 0
        %970 = vmatpush1.bf16.msra.mxu0 0
        %971 = vmatprep.subr.bf16.mxu0 0
        %972 = vmatpush1.bf16.msra.mxu0 0
        %973 = vmatprep.subr.bf16.mxu0 0
        %974 = vmatpush1.bf16.msra.mxu0 0
        %975 = vmatprep.mubr.bf16.mxu0 0
        %976 = vmatmul.mubr.bf16.gmra.mrb[0].mxu0 %v243
        %v977 = vpop.f32.mrb[0].mxu0
        %v978 = vadd.f32 0.0, %v977
        %v979 = vpop.f32.mrb[0].mxu0
        %v980 = vadd.f32 0.0, %v979
        %v981 = vpop.f32.mrb[0].mxu0
        %v982 = vpop.f32.mrb[0].mxu0
        %983 = vdwg.mxu0
        %984 = vmatprep.subr.bf16.mxu0 %v637
        %985 = vmatpush1.bf16.msra.mxu0 %v636
        %986 = vmatprep.subr.bf16.mxu0 %v649
        %987 = vmatpush1.bf16.msra.mxu0 %v648
        %988 = vmatprep.subr.bf16.mxu0 %v661
        %989 = vmatpush1.bf16.msra.mxu0 %v660
        %990 = vmatprep.subr.bf16.mxu0 %v673
        %991 = vmatpush1.bf16.msra.mxu0 %v672
        %992 = vmatprep.subr.bf16.mxu0 %v685
        %993 = vmatpush1.bf16.msra.mxu0 %v684
        %994 = vmatprep.subr.bf16.mxu0 %v697
        %995 = vmatpush1.bf16.msra.mxu0 %v696
        %996 = vmatprep.subr.bf16.mxu0 %v709
        %997 = vmatpush1.bf16.msra.mxu0 %v708
        %998 = vmatprep.subr.bf16.mxu0 %v721
        %999 = vmatpush1.bf16.msra.mxu0 %v720
        %1000 = vmatprep.subr.bf16.mxu0 0
        %1001 = vmatpush1.bf16.msra.mxu0 0
        %1002 = vmatprep.subr.bf16.mxu0 0
        %1003 = vmatpush1.bf16.msra.mxu0 0
        %1004 = vmatprep.subr.bf16.mxu0 0
        %1005 = vmatpush1.bf16.msra.mxu0 0
        %1006 = vmatprep.subr.bf16.mxu0 0
        %1007 = vmatpush1.bf16.msra.mxu0 0
        %1008 = vmatprep.subr.bf16.mxu0 0
        %1009 = vmatpush1.bf16.msra.mxu0 0
        %1010 = vmatprep.subr.bf16.mxu0 0
        %1011 = vmatpush1.bf16.msra.mxu0 0
        %1012 = vmatprep.subr.bf16.mxu0 0
        %1013 = vmatpush1.bf16.msra.mxu0 0
        %1014 = vmatprep.subr.bf16.mxu0 0
        %1015 = vmatpush1.bf16.msra.mxu0 0
        %1016 = vmatprep.mubr.bf16.mxu0 0
        %1017 = vmatmul.mubr.bf16.gmra.mrb[0].mxu0 %v243
        %v1018 = vpop.f32.mrb[0].mxu0
        %v1019 = vadd.f32 0.0, %v1018
        %v1020 = vpop.f32.mrb[0].mxu0
        %v1021 = vadd.f32 0.0, %v1020
        %v1022 = vpop.f32.mrb[0].mxu0
        %v1023 = vpop.f32.mrb[0].mxu0
        %1024 = vdwg.mxu0
        %1025 = vmatprep.subr.bf16.mxu0 %v639
        %1026 = vmatpush1.bf16.msra.mxu0 %v638
        %1027 = vmatprep.subr.bf16.mxu0 %v651
        %1028 = vmatpush1.bf16.msra.mxu0 %v650
        %1029 = vmatprep.subr.bf16.mxu0 %v663
        %1030 = vmatpush1.bf16.msra.mxu0 %v662
        %1031 = vmatprep.subr.bf16.mxu0 %v675
        %1032 = vmatpush1.bf16.msra.mxu0 %v674
        %1033 = vmatprep.subr.bf16.mxu0 %v687
        %1034 = vmatpush1.bf16.msra.mxu0 %v686
        %1035 = vmatprep.subr.bf16.mxu0 %v699
        %1036 = vmatpush1.bf16.msra.mxu0 %v698
        %1037 = vmatprep.subr.bf16.mxu0 %v711
        %1038 = vmatpush1.bf16.msra.mxu0 %v710
        %1039 = vmatprep.subr.bf16.mxu0 %v723
        %1040 = vmatpush1.bf16.msra.mxu0 %v722
        %1041 = vmatprep.subr.bf16.mxu0 0
        %1042 = vmatpush1.bf16.msra.mxu0 0
        %1043 = vmatprep.subr.bf16.mxu0 0
        %1044 = vmatpush1.bf16.msra.mxu0 0
        %1045 = vmatprep.subr.bf16.mxu0 0
        %1046 = vmatpush1.bf16.msra.mxu0 0
        %1047 = vmatprep.subr.bf16.mxu0 0
        %1048 = vmatpush1.bf16.msra.mxu0 0
        %1049 = vmatprep.subr.bf16.mxu0 0
        %1050 = vmatpush1.bf16.msra.mxu0 0
        %1051 = vmatprep.subr.bf16.mxu0 0
        %1052 = vmatpush1.bf16.msra.mxu0 0
        %1053 = vmatprep.subr.bf16.mxu0 0
        %1054 = vmatpush1.bf16.msra.mxu0 0
        %1055 = vmatprep.subr.bf16.mxu0 0
        %1056 = vmatpush1.bf16.msra.mxu0 0
        %1057 = vmatprep.mubr.bf16.mxu0 0
        %1058 = vmatmul.mubr.bf16.gmra.mrb[0].mxu0 %v243
        %v1059 = vpop.f32.mrb[0].mxu0
        %v1060 = vadd.f32 0.0, %v1059
        %v1061 = vpop.f32.mrb[0].mxu0
        %v1062 = vadd.f32 0.0, %v1061
        %v1063 = vpop.f32.mrb[0].mxu0
        %v1064 = vpop.f32.mrb[0].mxu0
        %1065 = vdwg.mxu0
        %v1066 = vpack.c.bf16 %v855, %v855
        %v1067 = vpack.c.bf16 %v937, %v937
        %v1068 = vpack.c.bf16 %v1019, %v1019
        %vm1069 = vcmask 523264
        %v1071 = vsel %vm1069, %v1066, 0
        %v1074 = vsel %vm1069, %v1067, 0
        %1076 = vmatprep.subr.bf16.mxu0 0
        %1077 = vmatpush1.bf16.xpose.msra.mxu0 %v1074
        %1078 = vmatprep.subr.bf16.mxu0 0
        %1079 = vmatpush1.bf16.xpose.msra.mxu0 0
        %1080 = vmatprep.subr.bf16.mxu0 0
        %1081 = vmatpush1.bf16.xpose.msra.mxu0 0
        %1082 = vmatprep.subr.bf16.mxu0 0
        %1083 = vmatpush1.bf16.xpose.msra.mxu0 0
        %1084 = vmatprep.subr.bf16.mxu0 0
        %1085 = vmatpush1.bf16.xpose.msra.mxu0 0
        %1086 = vmatprep.subr.bf16.mxu0 0
        %1087 = vmatpush1.bf16.xpose.msra.mxu0 0
        %1088 = vmatprep.subr.bf16.mxu0 0
        %1089 = vmatpush1.bf16.xpose.msra.mxu0 0
        %1090 = vmatprep.subr.bf16.mxu0 0
        %1091 = vmatpush1.bf16.xpose.msra.mxu0 0
        %1092 = vmatprep.subr.bf16.mxu0 0
        %1093 = vmatpush1.bf16.xpose.msra.mxu0 0
        %1094 = vmatprep.subr.bf16.mxu0 0
        %1095 = vmatpush1.bf16.xpose.msra.mxu0 0
        %1096 = vmatprep.subr.bf16.mxu0 0
        %1097 = vmatpush1.bf16.xpose.msra.mxu0 0
        %1098 = vmatprep.subr.bf16.mxu0 0
        %1099 = vmatpush1.bf16.xpose.msra.mxu0 0
        %1100 = vmatprep.subr.bf16.mxu0 0
        %1101 = vmatpush1.bf16.xpose.msra.mxu0 0
        %1102 = vmatprep.subr.bf16.mxu0 0
        %1103 = vmatpush1.bf16.xpose.msra.mxu0 0
        %1104 = vmatprep.subr.bf16.mxu0 0
        %1105 = vmatpush1.bf16.xpose.msra.mxu0 0
        %1106 = vmatprep.subr.bf16.mxu0 0
        %1107 = vmatpush1.bf16.xpose.msra.mxu0 0
        %1108 = vmatprep.mubr.bf16.mxu0 0
        %1109 = vmatmul.mubr.bf16.gmra.mrb[0].mxu0 %v1071
        %v1110 = vpop.f32.mrb[0].mxu0
        %v1111 = vadd.f32 0.0, %v1110
        %v1112 = vpop.f32.mrb[0].mxu0
        %v1113 = vpop.f32.mrb[0].mxu0
        %v1114 = vpop.f32.mrb[0].mxu0
        %1115 = vdwg.mxu0
        %vm1116 = vcmask 64512
        %v1117 = vsel %vm1116, %v1111, -inf
        %1118 = vmax.xlane.f32.xlu0 %v1117
        %v1119 = vpop.xlane.xlu0 %1118
        %v1120 = vsub.f32 %v1111, %v1119
        %v1121 = vmul.f32 %v1120, 1.442695
        %v1122 = vpow.pop %v1121
        %v1123 = vsel %vm1116, %v1122, 0.0
        %1124 = vadd.xlane.f32.xlu0 %v1123
        %v1125 = vpop.xlane.xlu0 %1124
        %v1126 = vrcp.pop %v1125
        %v1127 = vmul.f32 %v1122, %v1126
        %v1128 = vpack.c.bf16 %v1127, %v1127
        %v1130 = vsel %vm1116, %v1128, 0
        %vm1132 = vcmask 1043456
        %v1134 = vsel %vm1132, %v1068, 0
        %1136 = vmatprep.subr.bf16.mxu0 0
        %1137 = vmatpush1.bf16.msra.mxu0 %v1134
        %1138 = vmatprep.subr.bf16.mxu0 0
        %1139 = vmatpush1.bf16.msra.mxu0 0
        %1140 = vmatprep.subr.bf16.mxu0 0
        %1141 = vmatpush1.bf16.msra.mxu0 0
        %1142 = vmatprep.subr.bf16.mxu0 0
        %1143 = vmatpush1.bf16.msra.mxu0 0
        %1144 = vmatprep.subr.bf16.mxu0 0
        %1145 = vmatpush1.bf16.msra.mxu0 0
        %1146 = vmatprep.subr.bf16.mxu0 0
        %1147 = vmatpush1.bf16.msra.mxu0 0
        %1148 = vmatprep.subr.bf16.mxu0 0
        %1149 = vmatpush1.bf16.msra.mxu0 0
        %1150 = vmatprep.subr.bf16.mxu0 0
        %1151 = vmatpush1.bf16.msra.mxu0 0
        %1152 = vmatprep.subr.bf16.mxu0 0
        %1153 = vmatpush1.bf16.msra.mxu0 0
        %1154 = vmatprep.subr.bf16.mxu0 0
        %1155 = vmatpush1.bf16.msra.mxu0 0
        %1156 = vmatprep.subr.bf16.mxu0 0
        %1157 = vmatpush1.bf16.msra.mxu0 0
        %1158 = vmatprep.subr.bf16.mxu0 0
        %1159 = vmatpush1.bf16.msra.mxu0 0
        %1160 = vmatprep.subr.bf16.mxu0 0
        %1161 = vmatpush1.bf16.msra.mxu0 0
        %1162 = vmatprep.subr.bf16.mxu0 0
        %1163 = vmatpush1.bf16.msra.mxu0 0
        %1164 = vmatprep.subr.bf16.mxu0 0
        %1165 = vmatpush1.bf16.msra.mxu0 0
        %1166 = vmatprep.subr.bf16.mxu0 0
        %1167 = vmatpush1.bf16.msra.mxu0 0
        %1168 = vmatprep.mubr.bf16.mxu0 0
        %1169 = vmatmul.mubr.bf16.gmra.mrb[0].mxu0 %v1130
        %v1170 = vpop.f32.mrb[0].mxu0
        %v1171 = vadd.f32 0.0, %v1170
        %v1172 = vpop.f32.mrb[0].mxu0
        %v1173 = vpop.f32.mrb[0].mxu0
        %v1174 = vpop.f32.mrb[0].mxu0
        %1175 = vdwg.mxu0
        %v1176 = vpack.c.bf16 %v1171, %v1171
        %v1177 = vld [vmem:[#allocation7] sm:$0xf]
        %v1178 = vld [vmem:[#allocation7 + $0x4] sm:$0xf]
        %v1179 = vld [vmem:[#allocation7 + $0x8] sm:$0xf]
        %v1180 = vld [vmem:[#allocation7 + $0xc] sm:$0xf]
        %v1181 = vld [vmem:[#allocation7 + $0x10] sm:$0xf]
        %v1182 = vld [vmem:[#allocation7 + $0x14] sm:$0xf]
        %v1183 = vld [vmem:[#allocation7 + $0x18] sm:$0xf]
        %v1184 = vld [vmem:[#allocation7 + $0x1c] sm:$0xf]
        %1186 = vrot.lane.b32.xlu0 %v1066, 64
        %v1187 = vpop.permute.xlu0 %1186
        %1189 = vrot.lane.b32.xlu0 %v1067, 64
        %v1190 = vpop.permute.xlu0 %1189
        %v1192 = vsel %vm1069, %v1187, 0
        %v1195 = vsel %vm1069, %v1190, 0
        %1197 = vmatprep.subr.bf16.mxu0 0
        %1198 = vmatpush1.bf16.xpose.msra.mxu0 %v1195
        %1199 = vmatprep.subr.bf16.mxu0 0
        %1200 = vmatpush1.bf16.xpose.msra.mxu0 0
        %1201 = vmatprep.subr.bf16.mxu0 0
        %1202 = vmatpush1.bf16.xpose.msra.mxu0 0
        %1203 = vmatprep.subr.bf16.mxu0 0
        %1204 = vmatpush1.bf16.xpose.msra.mxu0 0
        %1205 = vmatprep.subr.bf16.mxu0 0
        %1206 = vmatpush1.bf16.xpose.msra.mxu0 0
        %1207 = vmatprep.subr.bf16.mxu0 0
        %1208 = vmatpush1.bf16.xpose.msra.mxu0 0
        %1209 = vmatprep.subr.bf16.mxu0 0
        %1210 = vmatpush1.bf16.xpose.msra.mxu0 0
        %1211 = vmatprep.subr.bf16.mxu0 0
        %1212 = vmatpush1.bf16.xpose.msra.mxu0 0
        %1213 = vmatprep.subr.bf16.mxu0 0
        %1214 = vmatpush1.bf16.xpose.msra.mxu0 0
        %1215 = vmatprep.subr.bf16.mxu0 0
        %1216 = vmatpush1.bf16.xpose.msra.mxu0 0
        %1217 = vmatprep.subr.bf16.mxu0 0
        %1218 = vmatpush1.bf16.xpose.msra.mxu0 0
        %1219 = vmatprep.subr.bf16.mxu0 0
        %1220 = vmatpush1.bf16.xpose.msra.mxu0 0
        %1221 = vmatprep.subr.bf16.mxu0 0
        %1222 = vmatpush1.bf16.xpose.msra.mxu0 0
        %1223 = vmatprep.subr.bf16.mxu0 0
        %1224 = vmatpush1.bf16.xpose.msra.mxu0 0
        %1225 = vmatprep.subr.bf16.mxu0 0
        %1226 = vmatpush1.bf16.xpose.msra.mxu0 0
        %1227 = vmatprep.subr.bf16.mxu0 0
        %1228 = vmatpush1.bf16.xpose.msra.mxu0 0
        %1229 = vmatprep.mubr.bf16.mxu0 0
        %1230 = vmatmul.mubr.bf16.gmra.mrb[0].mxu0 %v1192
        %v1231 = vpop.f32.mrb[0].mxu0
        %v1232 = vadd.f32 0.0, %v1231
        %v1233 = vpop.f32.mrb[0].mxu0
        %v1234 = vpop.f32.mrb[0].mxu0
        %v1235 = vpop.f32.mrb[0].mxu0
        %1236 = vdwg.mxu0
        %v1237 = vsel %vm1116, %v1232, -inf
        %1238 = vmax.xlane.f32.xlu0 %v1237
        %v1239 = vpop.xlane.xlu0 %1238
        %v1240 = vsub.f32 %v1232, %v1239
        %v1241 = vmul.f32 %v1240, 1.442695
        %v1242 = vpow.pop %v1241
        %v1243 = vsel %vm1116, %v1242, 0.0
        %1244 = vadd.xlane.f32.xlu0 %v1243
        %v1245 = vpop.xlane.xlu0 %1244
        %v1246 = vrcp.pop %v1245
        %v1247 = vmul.f32 %v1242, %v1246
        %v1248 = vpack.c.bf16 %v1247, %v1247
        %1250 = vrot.lane.b32.xlu0 %v1068, 64
        %v1251 = vpop.permute.xlu0 %1250
        %v1253 = vsel %vm1116, %v1248, 0
        %v1256 = vsel %vm1132, %v1251, 0
        %1258 = vmatprep.subr.bf16.mxu0 0
        %1259 = vmatpush1.bf16.msra.mxu0 %v1256
        %1260 = vmatprep.subr.bf16.mxu0 0
        %1261 = vmatpush1.bf16.msra.mxu0 0
        %1262 = vmatprep.subr.bf16.mxu0 0
        %1263 = vmatpush1.bf16.msra.mxu0 0
        %1264 = vmatprep.subr.bf16.mxu0 0
        %1265 = vmatpush1.bf16.msra.mxu0 0
        %1266 = vmatprep.subr.bf16.mxu0 0
        %1267 = vmatpush1.bf16.msra.mxu0 0
        %1268 = vmatprep.subr.bf16.mxu0 0
        %1269 = vmatpush1.bf16.msra.mxu0 0
        %1270 = vmatprep.subr.bf16.mxu0 0
        %1271 = vmatpush1.bf16.msra.mxu0 0
        %1272 = vmatprep.subr.bf16.mxu0 0
        %1273 = vmatpush1.bf16.msra.mxu0 0
        %1274 = vmatprep.subr.bf16.mxu0 0
        %1275 = vmatpush1.bf16.msra.mxu0 0
        %1276 = vmatprep.subr.bf16.mxu0 0
        %1277 = vmatpush1.bf16.msra.mxu0 0
        %1278 = vmatprep.subr.bf16.mxu0 0
        %1279 = vmatpush1.bf16.msra.mxu0 0
        %1280 = vmatprep.subr.bf16.mxu0 0
        %1281 = vmatpush1.bf16.msra.mxu0 0
        %1282 = vmatprep.subr.bf16.mxu0 0
        %1283 = vmatpush1.bf16.msra.mxu0 0
        %1284 = vmatprep.subr.bf16.mxu0 0
        %1285 = vmatpush1.bf16.msra.mxu0 0
        %1286 = vmatprep.subr.bf16.mxu0 0
        %1287 = vmatpush1.bf16.msra.mxu0 0
        %1288 = vmatprep.subr.bf16.mxu0 0
        %1289 = vmatpush1.bf16.msra.mxu0 0
        %1290 = vmatprep.mubr.bf16.mxu0 0
        %1291 = vmatmul.mubr.bf16.gmra.mrb[0].mxu0 %v1253
        %v1292 = vpop.f32.mrb[0].mxu0
        %v1293 = vadd.f32 0.0, %v1292
        %v1294 = vpop.f32.mrb[0].mxu0
        %v1295 = vpop.f32.mrb[0].mxu0
        %v1296 = vpop.f32.mrb[0].mxu0
        %1297 = vdwg.mxu0
        %v1298 = vpack.c.bf16 %v1293, %v1293
        %v1299 = vld [vmem:[#allocation7 + $0x20] sm:$0xf]
        %v1300 = vld [vmem:[#allocation7 + $0x24] sm:$0xf]
        %v1301 = vld [vmem:[#allocation7 + $0x28] sm:$0xf]
        %v1302 = vld [vmem:[#allocation7 + $0x2c] sm:$0xf]
        %v1303 = vld [vmem:[#allocation7 + $0x30] sm:$0xf]
        %v1304 = vld [vmem:[#allocation7 + $0x34] sm:$0xf]
        %v1305 = vld [vmem:[#allocation7 + $0x38] sm:$0xf]
        %v1306 = vld [vmem:[#allocation7 + $0x3c] sm:$0xf]
        %v1315 = vunpack.c.l.b16 %v1299
        %v1316 = vunpack.c.l.b16 %v1300
        %v1317 = vunpack.c.l.b16 %v1301
        %v1318 = vunpack.c.l.b16 %v1302
        %v1319 = vunpack.c.l.b16 %v1303
        %v1320 = vunpack.c.l.b16 %v1304
        %v1321 = vunpack.c.l.b16 %v1305
        %v1322 = vunpack.c.l.b16 %v1306
        %v1323 = vpack.c.b16 %v1316, %v1315
        %v1324 = vpack.c.b16 %v1318, %v1317
        %v1325 = vpack.c.b16 %v1320, %v1319
        %v1326 = vpack.c.b16 %v1322, %v1321
        %v1332 = vsel %vm1069, %v1298, 0
        %1334 = vmatprep.subr.bf16.mxu0 0
        %1335 = vmatpush1.bf16.msra.mxu0 %v1323
        %1336 = vmatprep.subr.bf16.mxu0 0
        %1337 = vmatpush1.bf16.msra.mxu0 %v1324
        %1338 = vmatprep.subr.bf16.mxu0 0
        %1339 = vmatpush1.bf16.msra.mxu0 %v1325
        %1340 = vmatprep.subr.bf16.mxu0 0
        %1341 = vmatpush1.bf16.msra.mxu0 %v1326
        %1342 = vmatprep.subr.bf16.mxu0 0
        %1343 = vmatpush1.bf16.msra.mxu0 0
        %1344 = vmatprep.subr.bf16.mxu0 0
        %1345 = vmatpush1.bf16.msra.mxu0 0
        %1346 = vmatprep.subr.bf16.mxu0 0
        %1347 = vmatpush1.bf16.msra.mxu0 0
        %1348 = vmatprep.subr.bf16.mxu0 0
        %1349 = vmatpush1.bf16.msra.mxu0 0
        %1350 = vmatprep.subr.bf16.mxu0 0
        %1351 = vmatpush1.bf16.msra.mxu0 0
        %1352 = vmatprep.subr.bf16.mxu0 0
        %1353 = vmatpush1.bf16.msra.mxu0 0
        %1354 = vmatprep.subr.bf16.mxu0 0
        %1355 = vmatpush1.bf16.msra.mxu0 0
        %1356 = vmatprep.subr.bf16.mxu0 0
        %1357 = vmatpush1.bf16.msra.mxu0 0
        %1358 = vmatprep.subr.bf16.mxu0 0
        %1359 = vmatpush1.bf16.msra.mxu0 0
        %1360 = vmatprep.subr.bf16.mxu0 0
        %1361 = vmatpush1.bf16.msra.mxu0 0
        %1362 = vmatprep.subr.bf16.mxu0 0
        %1363 = vmatpush1.bf16.msra.mxu0 0
        %1364 = vmatprep.subr.bf16.mxu0 0
        %1365 = vmatpush1.bf16.msra.mxu0 0
        %1366 = vmatprep.mubr.bf16.mxu0 0
        %1367 = vmatmul.mubr.bf16.gmra.mrb[0].mxu0 %v1332
        %v1368 = vpop.f32.mrb[0].mxu0
        %v1369 = vadd.f32 0.0, %v1368
        %v1370 = vpop.f32.mrb[0].mxu0
        %v1371 = vpop.f32.mrb[0].mxu0
        %v1372 = vpop.f32.mrb[0].mxu0
        %1373 = vdwg.mxu0
        %v1382 = vunpack.c.l.b16 %v1177
        %v1383 = vunpack.c.l.b16 %v1178
        %v1384 = vunpack.c.l.b16 %v1179
        %v1385 = vunpack.c.l.b16 %v1180
        %v1386 = vunpack.c.l.b16 %v1181
        %v1387 = vunpack.c.l.b16 %v1182
        %v1388 = vunpack.c.l.b16 %v1183
        %v1389 = vunpack.c.l.b16 %v1184
        %v1390 = vpack.c.b16 %v1383, %v1382
        %v1391 = vpack.c.b16 %v1385, %v1384
        %v1392 = vpack.c.b16 %v1387, %v1386
        %v1393 = vpack.c.b16 %v1389, %v1388
        %v1399 = vsel %vm1069, %v1176, 0
        %1401 = vmatprep.subr.bf16.mxu0 0
        %1402 = vmatpush1.bf16.msra.mxu0 %v1390
        %1403 = vmatprep.subr.bf16.mxu0 0
        %1404 = vmatpush1.bf16.msra.mxu0 %v1391
        %1405 = vmatprep.subr.bf16.mxu0 0
        %1406 = vmatpush1.bf16.msra.mxu0 %v1392
        %1407 = vmatprep.subr.bf16.mxu0 0
        %1408 = vmatpush1.bf16.msra.mxu0 %v1393
        %1409 = vmatprep.subr.bf16.mxu0 0
        %1410 = vmatpush1.bf16.msra.mxu0 0
        %1411 = vmatprep.subr.bf16.mxu0 0
        %1412 = vmatpush1.bf16.msra.mxu0 0
        %1413 = vmatprep.subr.bf16.mxu0 0
        %1414 = vmatpush1.bf16.msra.mxu0 0
        %1415 = vmatprep.subr.bf16.mxu0 0
        %1416 = vmatpush1.bf16.msra.mxu0 0
        %1417 = vmatprep.subr.bf16.mxu0 0
        %1418 = vmatpush1.bf16.msra.mxu0 0
        %1419 = vmatprep.subr.bf16.mxu0 0
        %1420 = vmatpush1.bf16.msra.mxu0 0
        %1421 = vmatprep.subr.bf16.mxu0 0
        %1422 = vmatpush1.bf16.msra.mxu0 0
        %1423 = vmatprep.subr.bf16.mxu0 0
        %1424 = vmatpush1.bf16.msra.mxu0 0
        %1425 = vmatprep.subr.bf16.mxu0 0
        %1426 = vmatpush1.bf16.msra.mxu0 0
        %1427 = vmatprep.subr.bf16.mxu0 0
        %1428 = vmatpush1.bf16.msra.mxu0 0
        %1429 = vmatprep.subr.bf16.mxu0 0
        %1430 = vmatpush1.bf16.msra.mxu0 0
        %1431 = vmatprep.subr.bf16.mxu0 0
        %1432 = vmatpush1.bf16.msra.mxu0 0
        %1433 = vmatprep.mubr.bf16.mxu0 0
        %1434 = vmatmul.mubr.bf16.gmra.mrb[0].mxu0 %v1399
        %v1435 = vpop.f32.mrb[0].mxu0
        %v1436 = vadd.f32 %v1369, %v1435
        %v1437 = vpop.f32.mrb[0].mxu0
        %v1438 = vpop.f32.mrb[0].mxu0
        %v1439 = vpop.f32.mrb[0].mxu0
        %1440 = vdwg.mxu0
        %v1441 = vpack.c.bf16 %v857, %v857
        %v1442 = vpack.c.bf16 %v939, %v939
        %v1443 = vpack.c.bf16 %v1021, %v1021
        %v1445 = vsel %vm1069, %v1441, 0
        %v1448 = vsel %vm1069, %v1442, 0
        %1450 = vmatprep.subr.bf16.mxu0 0
        %1451 = vmatpush1.bf16.xpose.msra.mxu0 %v1448
        %1452 = vmatprep.subr.bf16.mxu0 0
        %1453 = vmatpush1.bf16.xpose.msra.mxu0 0
        %1454 = vmatprep.subr.bf16.mxu0 0
        %1455 = vmatpush1.bf16.xpose.msra.mxu0 0
        %1456 = vmatprep.subr.bf16.mxu0 0
        %1457 = vmatpush1.bf16.xpose.msra.mxu0 0
        %1458 = vmatprep.subr.bf16.mxu0 0
        %1459 = vmatpush1.bf16.xpose.msra.mxu0 0
        %1460 = vmatprep.subr.bf16.mxu0 0
        %1461 = vmatpush1.bf16.xpose.msra.mxu0 0
        %1462 = vmatprep.subr.bf16.mxu0 0
        %1463 = vmatpush1.bf16.xpose.msra.mxu0 0
        %1464 = vmatprep.subr.bf16.mxu0 0
        %1465 = vmatpush1.bf16.xpose.msra.mxu0 0
        %1466 = vmatprep.subr.bf16.mxu0 0
        %1467 = vmatpush1.bf16.xpose.msra.mxu0 0
        %1468 = vmatprep.subr.bf16.mxu0 0
        %1469 = vmatpush1.bf16.xpose.msra.mxu0 0
        %1470 = vmatprep.subr.bf16.mxu0 0
        %1471 = vmatpush1.bf16.xpose.msra.mxu0 0
        %1472 = vmatprep.subr.bf16.mxu0 0
        %1473 = vmatpush1.bf16.xpose.msra.mxu0 0
        %1474 = vmatprep.subr.bf16.mxu0 0
        %1475 = vmatpush1.bf16.xpose.msra.mxu0 0
        %1476 = vmatprep.subr.bf16.mxu0 0
        %1477 = vmatpush1.bf16.xpose.msra.mxu0 0
        %1478 = vmatprep.subr.bf16.mxu0 0
        %1479 = vmatpush1.bf16.xpose.msra.mxu0 0
        %1480 = vmatprep.subr.bf16.mxu0 0
        %1481 = vmatpush1.bf16.xpose.msra.mxu0 0
        %1482 = vmatprep.mubr.bf16.mxu0 0
        %1483 = vmatmul.mubr.bf16.gmra.mrb[0].mxu0 %v1445
        %v1484 = vpop.f32.mrb[0].mxu0
        %v1485 = vadd.f32 0.0, %v1484
        %v1486 = vpop.f32.mrb[0].mxu0
        %v1487 = vpop.f32.mrb[0].mxu0
        %v1488 = vpop.f32.mrb[0].mxu0
        %1489 = vdwg.mxu0
        %v1490 = vsel %vm1116, %v1485, -inf
        %1491 = vmax.xlane.f32.xlu0 %v1490
        %v1492 = vpop.xlane.xlu0 %1491
        %v1493 = vsub.f32 %v1485, %v1492
        %v1494 = vmul.f32 %v1493, 1.442695
        %v1495 = vpow.pop %v1494
        %v1496 = vsel %vm1116, %v1495, 0.0
        %1497 = vadd.xlane.f32.xlu0 %v1496
        %v1498 = vpop.xlane.xlu0 %1497
        %v1499 = vrcp.pop %v1498
        %v1500 = vmul.f32 %v1495, %v1499
        %v1501 = vpack.c.bf16 %v1500, %v1500
        %v1503 = vsel %vm1116, %v1501, 0
        %v1506 = vsel %vm1132, %v1443, 0
        %1508 = vmatprep.subr.bf16.mxu0 0
        %1509 = vmatpush1.bf16.msra.mxu0 %v1506
        %1510 = vmatprep.subr.bf16.mxu0 0
        %1511 = vmatpush1.bf16.msra.mxu0 0
        %1512 = vmatprep.subr.bf16.mxu0 0
        %1513 = vmatpush1.bf16.msra.mxu0 0
        %1514 = vmatprep.subr.bf16.mxu0 0
        %1515 = vmatpush1.bf16.msra.mxu0 0
        %1516 = vmatprep.subr.bf16.mxu0 0
        %1517 = vmatpush1.bf16.msra.mxu0 0
        %1518 = vmatprep.subr.bf16.mxu0 0
        %1519 = vmatpush1.bf16.msra.mxu0 0
        %1520 = vmatprep.subr.bf16.mxu0 0
        %1521 = vmatpush1.bf16.msra.mxu0 0
        %1522 = vmatprep.subr.bf16.mxu0 0
        %1523 = vmatpush1.bf16.msra.mxu0 0
        %1524 = vmatprep.subr.bf16.mxu0 0
        %1525 = vmatpush1.bf16.msra.mxu0 0
        %1526 = vmatprep.subr.bf16.mxu0 0
        %1527 = vmatpush1.bf16.msra.mxu0 0
        %1528 = vmatprep.subr.bf16.mxu0 0
        %1529 = vmatpush1.bf16.msra.mxu0 0
        %1530 = vmatprep.subr.bf16.mxu0 0
        %1531 = vmatpush1.bf16.msra.mxu0 0
        %1532 = vmatprep.subr.bf16.mxu0 0
        %1533 = vmatpush1.bf16.msra.mxu0 0
        %1534 = vmatprep.subr.bf16.mxu0 0
        %1535 = vmatpush1.bf16.msra.mxu0 0
        %1536 = vmatprep.subr.bf16.mxu0 0
        %1537 = vmatpush1.bf16.msra.mxu0 0
        %1538 = vmatprep.subr.bf16.mxu0 0
        %1539 = vmatpush1.bf16.msra.mxu0 0
        %1540 = vmatprep.mubr.bf16.mxu0 0
        %1541 = vmatmul.mubr.bf16.gmra.mrb[0].mxu0 %v1503
        %v1542 = vpop.f32.mrb[0].mxu0
        %v1543 = vadd.f32 0.0, %v1542
        %v1544 = vpop.f32.mrb[0].mxu0
        %v1545 = vpop.f32.mrb[0].mxu0
        %v1546 = vpop.f32.mrb[0].mxu0
        %1547 = vdwg.mxu0
        %v1548 = vpack.c.bf16 %v1543, %v1543
        %v1549 = vld [vmem:[#allocation7 + $0x40] sm:$0xf]
        %v1550 = vld [vmem:[#allocation7 + $0x44] sm:$0xf]
        %v1551 = vld [vmem:[#allocation7 + $0x48] sm:$0xf]
        %v1552 = vld [vmem:[#allocation7 + $0x4c] sm:$0xf]
        %v1553 = vld [vmem:[#allocation7 + $0x50] sm:$0xf]
        %v1554 = vld [vmem:[#allocation7 + $0x54] sm:$0xf]
        %v1555 = vld [vmem:[#allocation7 + $0x58] sm:$0xf]
        %v1556 = vld [vmem:[#allocation7 + $0x5c] sm:$0xf]
        %v1565 = vunpack.c.l.b16 %v1549
        %v1566 = vunpack.c.l.b16 %v1550
        %v1567 = vunpack.c.l.b16 %v1551
        %v1568 = vunpack.c.l.b16 %v1552
        %v1569 = vunpack.c.l.b16 %v1553
        %v1570 = vunpack.c.l.b16 %v1554
        %v1571 = vunpack.c.l.b16 %v1555
        %v1572 = vunpack.c.l.b16 %v1556
        %v1573 = vpack.c.b16 %v1566, %v1565
        %v1574 = vpack.c.b16 %v1568, %v1567
        %v1575 = vpack.c.b16 %v1570, %v1569
        %v1576 = vpack.c.b16 %v1572, %v1571
        %v1582 = vsel %vm1069, %v1548, 0
        %1584 = vmatprep.subr.bf16.mxu0 0
        %1585 = vmatpush1.bf16.msra.mxu0 %v1573
        %1586 = vmatprep.subr.bf16.mxu0 0
        %1587 = vmatpush1.bf16.msra.mxu0 %v1574
        %1588 = vmatprep.subr.bf16.mxu0 0
        %1589 = vmatpush1.bf16.msra.mxu0 %v1575
        %1590 = vmatprep.subr.bf16.mxu0 0
        %1591 = vmatpush1.bf16.msra.mxu0 %v1576
        %1592 = vmatprep.subr.bf16.mxu0 0
        %1593 = vmatpush1.bf16.msra.mxu0 0
        %1594 = vmatprep.subr.bf16.mxu0 0
        %1595 = vmatpush1.bf16.msra.mxu0 0
        %1596 = vmatprep.subr.bf16.mxu0 0
        %1597 = vmatpush1.bf16.msra.mxu0 0
        %1598 = vmatprep.subr.bf16.mxu0 0
        %1599 = vmatpush1.bf16.msra.mxu0 0
        %1600 = vmatprep.subr.bf16.mxu0 0
        %1601 = vmatpush1.bf16.msra.mxu0 0
        %1602 = vmatprep.subr.bf16.mxu0 0
        %1603 = vmatpush1.bf16.msra.mxu0 0
        %1604 = vmatprep.subr.bf16.mxu0 0
        %1605 = vmatpush1.bf16.msra.mxu0 0
        %1606 = vmatprep.subr.bf16.mxu0 0
        %1607 = vmatpush1.bf16.msra.mxu0 0
        %1608 = vmatprep.subr.bf16.mxu0 0
        %1609 = vmatpush1.bf16.msra.mxu0 0
        %1610 = vmatprep.subr.bf16.mxu0 0
        %1611 = vmatpush1.bf16.msra.mxu0 0
        %1612 = vmatprep.subr.bf16.mxu0 0
        %1613 = vmatpush1.bf16.msra.mxu0 0
        %1614 = vmatprep.subr.bf16.mxu0 0
        %1615 = vmatpush1.bf16.msra.mxu0 0
        %1616 = vmatprep.mubr.bf16.mxu0 0
        %1617 = vmatmul.mubr.bf16.gmra.mrb[0].mxu0 %v1582
        %v1618 = vpop.f32.mrb[0].mxu0
        %v1619 = vadd.f32 0.0, %v1618
        %v1620 = vpop.f32.mrb[0].mxu0
        %v1621 = vpop.f32.mrb[0].mxu0
        %v1622 = vpop.f32.mrb[0].mxu0
        %1623 = vdwg.mxu0
        %v1624 = vadd.f32 %v1436, %v1619
        %1626 = vrot.lane.b32.xlu0 %v1441, 64
        %v1627 = vpop.permute.xlu0 %1626
        %1629 = vrot.lane.b32.xlu0 %v1442, 64
        %v1630 = vpop.permute.xlu0 %1629
        %v1632 = vsel %vm1069, %v1627, 0
        %v1635 = vsel %vm1069, %v1630, 0
        %1637 = vmatprep.subr.bf16.mxu0 0
        %1638 = vmatpush1.bf16.xpose.msra.mxu0 %v1635
        %1639 = vmatprep.subr.bf16.mxu0 0
        %1640 = vmatpush1.bf16.xpose.msra.mxu0 0
        %1641 = vmatprep.subr.bf16.mxu0 0
        %1642 = vmatpush1.bf16.xpose.msra.mxu0 0
        %1643 = vmatprep.subr.bf16.mxu0 0
        %1644 = vmatpush1.bf16.xpose.msra.mxu0 0
        %1645 = vmatprep.subr.bf16.mxu0 0
        %1646 = vmatpush1.bf16.xpose.msra.mxu0 0
        %1647 = vmatprep.subr.bf16.mxu0 0
        %1648 = vmatpush1.bf16.xpose.msra.mxu0 0
        %1649 = vmatprep.subr.bf16.mxu0 0
        %1650 = vmatpush1.bf16.xpose.msra.mxu0 0
        %1651 = vmatprep.subr.bf16.mxu0 0
        %1652 = vmatpush1.bf16.xpose.msra.mxu0 0
        %1653 = vmatprep.subr.bf16.mxu0 0
        %1654 = vmatpush1.bf16.xpose.msra.mxu0 0
        %1655 = vmatprep.subr.bf16.mxu0 0
        %1656 = vmatpush1.bf16.xpose.msra.mxu0 0
        %1657 = vmatprep.subr.bf16.mxu0 0
        %1658 = vmatpush1.bf16.xpose.msra.mxu0 0
        %1659 = vmatprep.subr.bf16.mxu0 0
        %1660 = vmatpush1.bf16.xpose.msra.mxu0 0
        %1661 = vmatprep.subr.bf16.mxu0 0
        %1662 = vmatpush1.bf16.xpose.msra.mxu0 0
        %1663 = vmatprep.subr.bf16.mxu0 0
        %1664 = vmatpush1.bf16.xpose.msra.mxu0 0
        %1665 = vmatprep.subr.bf16.mxu0 0
        %1666 = vmatpush1.bf16.xpose.msra.mxu0 0
        %1667 = vmatprep.subr.bf16.mxu0 0
        %1668 = vmatpush1.bf16.xpose.msra.mxu0 0
        %1669 = vmatprep.mubr.bf16.mxu0 0
        %1670 = vmatmul.mubr.bf16.gmra.mrb[0].mxu0 %v1632
        %v1671 = vpop.f32.mrb[0].mxu0
        %v1672 = vadd.f32 0.0, %v1671
        %v1673 = vpop.f32.mrb[0].mxu0
        %v1674 = vpop.f32.mrb[0].mxu0
        %v1675 = vpop.f32.mrb[0].mxu0
        %1676 = vdwg.mxu0
        %v1677 = vsel %vm1116, %v1672, -inf
        %1678 = vmax.xlane.f32.xlu0 %v1677
        %v1679 = vpop.xlane.xlu0 %1678
        %v1680 = vsub.f32 %v1672, %v1679
        %v1681 = vmul.f32 %v1680, 1.442695
        %v1682 = vpow.pop %v1681
        %v1683 = vsel %vm1116, %v1682, 0.0
        %1684 = vadd.xlane.f32.xlu0 %v1683
        %v1685 = vpop.xlane.xlu0 %1684
        %v1686 = vrcp.pop %v1685
        %v1687 = vmul.f32 %v1682, %v1686
        %v1688 = vpack.c.bf16 %v1687, %v1687
        %1690 = vrot.lane.b32.xlu0 %v1443, 64
        %v1691 = vpop.permute.xlu0 %1690
        %v1693 = vsel %vm1116, %v1688, 0
        %v1696 = vsel %vm1132, %v1691, 0
        %1698 = vmatprep.subr.bf16.mxu0 0
        %1699 = vmatpush1.bf16.msra.mxu0 %v1696
        %1700 = vmatprep.subr.bf16.mxu0 0
        %1701 = vmatpush1.bf16.msra.mxu0 0
        %1702 = vmatprep.subr.bf16.mxu0 0
        %1703 = vmatpush1.bf16.msra.mxu0 0
        %1704 = vmatprep.subr.bf16.mxu0 0
        %1705 = vmatpush1.bf16.msra.mxu0 0
        %1706 = vmatprep.subr.bf16.mxu0 0
        %1707 = vmatpush1.bf16.msra.mxu0 0
        %1708 = vmatprep.subr.bf16.mxu0 0
        %1709 = vmatpush1.bf16.msra.mxu0 0
        %1710 = vmatprep.subr.bf16.mxu0 0
        %1711 = vmatpush1.bf16.msra.mxu0 0
        %1712 = vmatprep.subr.bf16.mxu0 0
        %1713 = vmatpush1.bf16.msra.mxu0 0
        %1714 = vmatprep.subr.bf16.mxu0 0
        %1715 = vmatpush1.bf16.msra.mxu0 0
        %1716 = vmatprep.subr.bf16.mxu0 0
        %1717 = vmatpush1.bf16.msra.mxu0 0
        %1718 = vmatprep.subr.bf16.mxu0 0
        %1719 = vmatpush1.bf16.msra.mxu0 0
        %1720 = vmatprep.subr.bf16.mxu0 0
        %1721 = vmatpush1.bf16.msra.mxu0 0
        %1722 = vmatprep.subr.bf16.mxu0 0
        %1723 = vmatpush1.bf16.msra.mxu0 0
        %1724 = vmatprep.subr.bf16.mxu0 0
        %1725 = vmatpush1.bf16.msra.mxu0 0
        %1726 = vmatprep.subr.bf16.mxu0 0
        %1727 = vmatpush1.bf16.msra.mxu0 0
        %1728 = vmatprep.subr.bf16.mxu0 0
        %1729 = vmatpush1.bf16.msra.mxu0 0
        %1730 = vmatprep.mubr.bf16.mxu0 0
        %1731 = vmatmul.mubr.bf16.gmra.mrb[0].mxu0 %v1693
        %v1732 = vpop.f32.mrb[0].mxu0
        %v1733 = vadd.f32 0.0, %v1732
        %v1734 = vpop.f32.mrb[0].mxu0
        %v1735 = vpop.f32.mrb[0].mxu0
        %v1736 = vpop.f32.mrb[0].mxu0
        %1737 = vdwg.mxu0
        %v1738 = vpack.c.bf16 %v1733, %v1733
        %v1739 = vld [vmem:[#allocation7 + $0x60] sm:$0xf]
        %v1740 = vld [vmem:[#allocation7 + $0x64] sm:$0xf]
        %v1741 = vld [vmem:[#allocation7 + $0x68] sm:$0xf]
        %v1742 = vld [vmem:[#allocation7 + $0x6c] sm:$0xf]
        %v1743 = vld [vmem:[#allocation7 + $0x70] sm:$0xf]
        %v1744 = vld [vmem:[#allocation7 + $0x74] sm:$0xf]
        %v1745 = vld [vmem:[#allocation7 + $0x78] sm:$0xf]
        %v1746 = vld [vmem:[#allocation7 + $0x7c] sm:$0xf]
        %v1755 = vunpack.c.l.b16 %v1739
        %v1756 = vunpack.c.l.b16 %v1740
        %v1757 = vunpack.c.l.b16 %v1741
        %v1758 = vunpack.c.l.b16 %v1742
        %v1759 = vunpack.c.l.b16 %v1743
        %v1760 = vunpack.c.l.b16 %v1744
        %v1761 = vunpack.c.l.b16 %v1745
        %v1762 = vunpack.c.l.b16 %v1746
        %v1763 = vpack.c.b16 %v1756, %v1755
        %v1764 = vpack.c.b16 %v1758, %v1757
        %v1765 = vpack.c.b16 %v1760, %v1759
        %v1766 = vpack.c.b16 %v1762, %v1761
        %v1772 = vsel %vm1069, %v1738, 0
        %1774 = vmatprep.subr.bf16.mxu0 0
        %1775 = vmatpush1.bf16.msra.mxu0 %v1763
        %1776 = vmatprep.subr.bf16.mxu0 0
        %1777 = vmatpush1.bf16.msra.mxu0 %v1764
        %1778 = vmatprep.subr.bf16.mxu0 0
        %1779 = vmatpush1.bf16.msra.mxu0 %v1765
        %1780 = vmatprep.subr.bf16.mxu0 0
        %1781 = vmatpush1.bf16.msra.mxu0 %v1766
        %1782 = vmatprep.subr.bf16.mxu0 0
        %1783 = vmatpush1.bf16.msra.mxu0 0
        %1784 = vmatprep.subr.bf16.mxu0 0
        %1785 = vmatpush1.bf16.msra.mxu0 0
        %1786 = vmatprep.subr.bf16.mxu0 0
        %1787 = vmatpush1.bf16.msra.mxu0 0
        %1788 = vmatprep.subr.bf16.mxu0 0
        %1789 = vmatpush1.bf16.msra.mxu0 0
        %1790 = vmatprep.subr.bf16.mxu0 0
        %1791 = vmatpush1.bf16.msra.mxu0 0
        %1792 = vmatprep.subr.bf16.mxu0 0
        %1793 = vmatpush1.bf16.msra.mxu0 0
        %1794 = vmatprep.subr.bf16.mxu0 0
        %1795 = vmatpush1.bf16.msra.mxu0 0
        %1796 = vmatprep.subr.bf16.mxu0 0
        %1797 = vmatpush1.bf16.msra.mxu0 0
        %1798 = vmatprep.subr.bf16.mxu0 0
        %1799 = vmatpush1.bf16.msra.mxu0 0
        %1800 = vmatprep.subr.bf16.mxu0 0
        %1801 = vmatpush1.bf16.msra.mxu0 0
        %1802 = vmatprep.subr.bf16.mxu0 0
        %1803 = vmatpush1.bf16.msra.mxu0 0
        %1804 = vmatprep.subr.bf16.mxu0 0
        %1805 = vmatpush1.bf16.msra.mxu0 0
        %1806 = vmatprep.mubr.bf16.mxu0 0
        %1807 = vmatmul.mubr.bf16.gmra.mrb[0].mxu0 %v1772
        %v1808 = vpop.f32.mrb[0].mxu0
        %v1809 = vadd.f32 0.0, %v1808
        %v1810 = vpop.f32.mrb[0].mxu0
        %v1811 = vpop.f32.mrb[0].mxu0
        %v1812 = vpop.f32.mrb[0].mxu0
        %1813 = vdwg.mxu0
        %v1814 = vadd.f32 %v1624, %v1809
        %v1815 = vpack.c.bf16 %v896, %v896
        %v1816 = vpack.c.bf16 %v978, %v978
        %v1817 = vpack.c.bf16 %v1060, %v1060
        %v1819 = vsel %vm1069, %v1815, 0
        %v1822 = vsel %vm1069, %v1816, 0
        %1824 = vmatprep.subr.bf16.mxu0 0
        %1825 = vmatpush1.bf16.xpose.msra.mxu0 %v1822
        %1826 = vmatprep.subr.bf16.mxu0 0
        %1827 = vmatpush1.bf16.xpose.msra.mxu0 0
        %1828 = vmatprep.subr.bf16.mxu0 0
        %1829 = vmatpush1.bf16.xpose.msra.mxu0 0
        %1830 = vmatprep.subr.bf16.mxu0 0
        %1831 = vmatpush1.bf16.xpose.msra.mxu0 0
        %1832 = vmatprep.subr.bf16.mxu0 0
        %1833 = vmatpush1.bf16.xpose.msra.mxu0 0
        %1834 = vmatprep.subr.bf16.mxu0 0
        %1835 = vmatpush1.bf16.xpose.msra.mxu0 0
        %1836 = vmatprep.subr.bf16.mxu0 0
        %1837 = vmatpush1.bf16.xpose.msra.mxu0 0
        %1838 = vmatprep.subr.bf16.mxu0 0
        %1839 = vmatpush1.bf16.xpose.msra.mxu0 0
        %1840 = vmatprep.subr.bf16.mxu0 0
        %1841 = vmatpush1.bf16.xpose.msra.mxu0 0
        %1842 = vmatprep.subr.bf16.mxu0 0
        %1843 = vmatpush1.bf16.xpose.msra.mxu0 0
        %1844 = vmatprep.subr.bf16.mxu0 0
        %1845 = vmatpush1.bf16.xpose.msra.mxu0 0
        %1846 = vmatprep.subr.bf16.mxu0 0
        %1847 = vmatpush1.bf16.xpose.msra.mxu0 0
        %1848 = vmatprep.subr.bf16.mxu0 0
        %1849 = vmatpush1.bf16.xpose.msra.mxu0 0
        %1850 = vmatprep.subr.bf16.mxu0 0
        %1851 = vmatpush1.bf16.xpose.msra.mxu0 0
        %1852 = vmatprep.subr.bf16.mxu0 0
        %1853 = vmatpush1.bf16.xpose.msra.mxu0 0
        %1854 = vmatprep.subr.bf16.mxu0 0
        %1855 = vmatpush1.bf16.xpose.msra.mxu0 0
        %1856 = vmatprep.mubr.bf16.mxu0 0
        %1857 = vmatmul.mubr.bf16.gmra.mrb[0].mxu0 %v1819
        %v1858 = vpop.f32.mrb[0].mxu0
        %v1859 = vadd.f32 0.0, %v1858
        %v1860 = vpop.f32.mrb[0].mxu0
        %v1861 = vpop.f32.mrb[0].mxu0
        %v1862 = vpop.f32.mrb[0].mxu0
        %1863 = vdwg.mxu0
        %v1864 = vsel %vm1116, %v1859, -inf
        %1865 = vmax.xlane.f32.xlu0 %v1864
        %v1866 = vpop.xlane.xlu0 %1865
        %v1867 = vsub.f32 %v1859, %v1866
        %v1868 = vmul.f32 %v1867, 1.442695
        %v1869 = vpow.pop %v1868
        %v1870 = vsel %vm1116, %v1869, 0.0
        %1871 = vadd.xlane.f32.xlu0 %v1870
        %v1872 = vpop.xlane.xlu0 %1871
        %v1873 = vrcp.pop %v1872
        %v1874 = vmul.f32 %v1869, %v1873
        %v1875 = vpack.c.bf16 %v1874, %v1874
        %v1877 = vsel %vm1116, %v1875, 0
        %v1880 = vsel %vm1132, %v1817, 0
        %1882 = vmatprep.subr.bf16.mxu0 0
        %1883 = vmatpush1.bf16.msra.mxu0 %v1880
        %1884 = vmatprep.subr.bf16.mxu0 0
        %1885 = vmatpush1.bf16.msra.mxu0 0
        %1886 = vmatprep.subr.bf16.mxu0 0
        %1887 = vmatpush1.bf16.msra.mxu0 0
        %1888 = vmatprep.subr.bf16.mxu0 0
        %1889 = vmatpush1.bf16.msra.mxu0 0
        %1890 = vmatprep.subr.bf16.mxu0 0
        %1891 = vmatpush1.bf16.msra.mxu0 0
        %1892 = vmatprep.subr.bf16.mxu0 0
        %1893 = vmatpush1.bf16.msra.mxu0 0
        %1894 = vmatprep.subr.bf16.mxu0 0
        %1895 = vmatpush1.bf16.msra.mxu0 0
        %1896 = vmatprep.subr.bf16.mxu0 0
        %1897 = vmatpush1.bf16.msra.mxu0 0
        %1898 = vmatprep.subr.bf16.mxu0 0
        %1899 = vmatpush1.bf16.msra.mxu0 0
        %1900 = vmatprep.subr.bf16.mxu0 0
        %1901 = vmatpush1.bf16.msra.mxu0 0
        %1902 = vmatprep.subr.bf16.mxu0 0
        %1903 = vmatpush1.bf16.msra.mxu0 0
        %1904 = vmatprep.subr.bf16.mxu0 0
        %1905 = vmatpush1.bf16.msra.mxu0 0
        %1906 = vmatprep.subr.bf16.mxu0 0
        %1907 = vmatpush1.bf16.msra.mxu0 0
        %1908 = vmatprep.subr.bf16.mxu0 0
        %1909 = vmatpush1.bf16.msra.mxu0 0
        %1910 = vmatprep.subr.bf16.mxu0 0
        %1911 = vmatpush1.bf16.msra.mxu0 0
        %1912 = vmatprep.subr.bf16.mxu0 0
        %1913 = vmatpush1.bf16.msra.mxu0 0
        %1914 = vmatprep.mubr.bf16.mxu0 0
        %1915 = vmatmul.mubr.bf16.gmra.mrb[0].mxu0 %v1877
        %v1916 = vpop.f32.mrb[0].mxu0
        %v1917 = vadd.f32 0.0, %v1916
        %v1918 = vpop.f32.mrb[0].mxu0
        %v1919 = vpop.f32.mrb[0].mxu0
        %v1920 = vpop.f32.mrb[0].mxu0
        %1921 = vdwg.mxu0
        %v1922 = vpack.c.bf16 %v1917, %v1917
        %v1923 = vld [vmem:[#allocation7 + $0x80] sm:$0xf]
        %v1924 = vld [vmem:[#allocation7 + $0x84] sm:$0xf]
        %v1925 = vld [vmem:[#allocation7 + $0x88] sm:$0xf]
        %v1926 = vld [vmem:[#allocation7 + $0x8c] sm:$0xf]
        %v1927 = vld [vmem:[#allocation7 + $0x90] sm:$0xf]
        %v1928 = vld [vmem:[#allocation7 + $0x94] sm:$0xf]
        %v1929 = vld [vmem:[#allocation7 + $0x98] sm:$0xf]
        %v1930 = vld [vmem:[#allocation7 + $0x9c] sm:$0xf]
        %v1939 = vunpack.c.l.b16 %v1923
        %v1940 = vunpack.c.l.b16 %v1924
        %v1941 = vunpack.c.l.b16 %v1925
        %v1942 = vunpack.c.l.b16 %v1926
        %v1943 = vunpack.c.l.b16 %v1927
        %v1944 = vunpack.c.l.b16 %v1928
        %v1945 = vunpack.c.l.b16 %v1929
        %v1946 = vunpack.c.l.b16 %v1930
        %v1947 = vpack.c.b16 %v1940, %v1939
        %v1948 = vpack.c.b16 %v1942, %v1941
        %v1949 = vpack.c.b16 %v1944, %v1943
        %v1950 = vpack.c.b16 %v1946, %v1945
        %v1956 = vsel %vm1069, %v1922, 0
        %1958 = vmatprep.subr.bf16.mxu0 0
        %1959 = vmatpush1.bf16.msra.mxu0 %v1947
        %1960 = vmatprep.subr.bf16.mxu0 0
        %1961 = vmatpush1.bf16.msra.mxu0 %v1948
        %1962 = vmatprep.subr.bf16.mxu0 0
        %1963 = vmatpush1.bf16.msra.mxu0 %v1949
        %1964 = vmatprep.subr.bf16.mxu0 0
        %1965 = vmatpush1.bf16.msra.mxu0 %v1950
        %1966 = vmatprep.subr.bf16.mxu0 0
        %1967 = vmatpush1.bf16.msra.mxu0 0
        %1968 = vmatprep.subr.bf16.mxu0 0
        %1969 = vmatpush1.bf16.msra.mxu0 0
        %1970 = vmatprep.subr.bf16.mxu0 0
        %1971 = vmatpush1.bf16.msra.mxu0 0
        %1972 = vmatprep.subr.bf16.mxu0 0
        %1973 = vmatpush1.bf16.msra.mxu0 0
        %1974 = vmatprep.subr.bf16.mxu0 0
        %1975 = vmatpush1.bf16.msra.mxu0 0
        %1976 = vmatprep.subr.bf16.mxu0 0
        %1977 = vmatpush1.bf16.msra.mxu0 0
        %1978 = vmatprep.subr.bf16.mxu0 0
        %1979 = vmatpush1.bf16.msra.mxu0 0
        %1980 = vmatprep.subr.bf16.mxu0 0
        %1981 = vmatpush1.bf16.msra.mxu0 0
        %1982 = vmatprep.subr.bf16.mxu0 0
        %1983 = vmatpush1.bf16.msra.mxu0 0
        %1984 = vmatprep.subr.bf16.mxu0 0
        %1985 = vmatpush1.bf16.msra.mxu0 0
        %1986 = vmatprep.subr.bf16.mxu0 0
        %1987 = vmatpush1.bf16.msra.mxu0 0
        %1988 = vmatprep.subr.bf16.mxu0 0
        %1989 = vmatpush1.bf16.msra.mxu0 0
        %1990 = vmatprep.mubr.bf16.mxu0 0
        %1991 = vmatmul.mubr.bf16.gmra.mrb[0].mxu0 %v1956
        %v1992 = vpop.f32.mrb[0].mxu0
        %v1993 = vadd.f32 0.0, %v1992
        %v1994 = vpop.f32.mrb[0].mxu0
        %v1995 = vpop.f32.mrb[0].mxu0
        %v1996 = vpop.f32.mrb[0].mxu0
        %1997 = vdwg.mxu0
        %v1998 = vadd.f32 %v1814, %v1993
        %2000 = vrot.lane.b32.xlu0 %v1815, 64
        %v2001 = vpop.permute.xlu0 %2000
        %2003 = vrot.lane.b32.xlu0 %v1816, 64
        %v2004 = vpop.permute.xlu0 %2003
        %v2006 = vsel %vm1069, %v2001, 0
        %v2009 = vsel %vm1069, %v2004, 0
        %2011 = vmatprep.subr.bf16.mxu0 0
        %2012 = vmatpush1.bf16.xpose.msra.mxu0 %v2009
        %2013 = vmatprep.subr.bf16.mxu0 0
        %2014 = vmatpush1.bf16.xpose.msra.mxu0 0
        %2015 = vmatprep.subr.bf16.mxu0 0
        %2016 = vmatpush1.bf16.xpose.msra.mxu0 0
        %2017 = vmatprep.subr.bf16.mxu0 0
        %2018 = vmatpush1.bf16.xpose.msra.mxu0 0
        %2019 = vmatprep.subr.bf16.mxu0 0
        %2020 = vmatpush1.bf16.xpose.msra.mxu0 0
        %2021 = vmatprep.subr.bf16.mxu0 0
        %2022 = vmatpush1.bf16.xpose.msra.mxu0 0
        %2023 = vmatprep.subr.bf16.mxu0 0
        %2024 = vmatpush1.bf16.xpose.msra.mxu0 0
        %2025 = vmatprep.subr.bf16.mxu0 0
        %2026 = vmatpush1.bf16.xpose.msra.mxu0 0
        %2027 = vmatprep.subr.bf16.mxu0 0
        %2028 = vmatpush1.bf16.xpose.msra.mxu0 0
        %2029 = vmatprep.subr.bf16.mxu0 0
        %2030 = vmatpush1.bf16.xpose.msra.mxu0 0
        %2031 = vmatprep.subr.bf16.mxu0 0
        %2032 = vmatpush1.bf16.xpose.msra.mxu0 0
        %2033 = vmatprep.subr.bf16.mxu0 0
        %2034 = vmatpush1.bf16.xpose.msra.mxu0 0
        %2035 = vmatprep.subr.bf16.mxu0 0
        %2036 = vmatpush1.bf16.xpose.msra.mxu0 0
        %2037 = vmatprep.subr.bf16.mxu0 0
        %2038 = vmatpush1.bf16.xpose.msra.mxu0 0
        %2039 = vmatprep.subr.bf16.mxu0 0
        %2040 = vmatpush1.bf16.xpose.msra.mxu0 0
        %2041 = vmatprep.subr.bf16.mxu0 0
        %2042 = vmatpush1.bf16.xpose.msra.mxu0 0
        %2043 = vmatprep.mubr.bf16.mxu0 0
        %2044 = vmatmul.mubr.bf16.gmra.mrb[0].mxu0 %v2006
        %v2045 = vpop.f32.mrb[0].mxu0
        %v2046 = vadd.f32 0.0, %v2045
        %v2047 = vpop.f32.mrb[0].mxu0
        %v2048 = vpop.f32.mrb[0].mxu0
        %v2049 = vpop.f32.mrb[0].mxu0
        %2050 = vdwg.mxu0
        %v2051 = vsel %vm1116, %v2046, -inf
        %2052 = vmax.xlane.f32.xlu0 %v2051
        %v2053 = vpop.xlane.xlu0 %2052
        %v2054 = vsub.f32 %v2046, %v2053
        %v2055 = vmul.f32 %v2054, 1.442695
        %v2056 = vpow.pop %v2055
        %v2057 = vsel %vm1116, %v2056, 0.0
        %2058 = vadd.xlane.f32.xlu0 %v2057
        %v2059 = vpop.xlane.xlu0 %2058
        %v2060 = vrcp.pop %v2059
        %v2061 = vmul.f32 %v2056, %v2060
        %v2062 = vpack.c.bf16 %v2061, %v2061
        %2064 = vrot.lane.b32.xlu0 %v1817, 64
        %v2065 = vpop.permute.xlu0 %2064
        %v2067 = vsel %vm1116, %v2062, 0
        %v2070 = vsel %vm1132, %v2065, 0
        %2072 = vmatprep.subr.bf16.mxu0 0
        %2073 = vmatpush1.bf16.msra.mxu0 %v2070
        %2074 = vmatprep.subr.bf16.mxu0 0
        %2075 = vmatpush1.bf16.msra.mxu0 0
        %2076 = vmatprep.subr.bf16.mxu0 0
        %2077 = vmatpush1.bf16.msra.mxu0 0
        %2078 = vmatprep.subr.bf16.mxu0 0
        %2079 = vmatpush1.bf16.msra.mxu0 0
        %2080 = vmatprep.subr.bf16.mxu0 0
        %2081 = vmatpush1.bf16.msra.mxu0 0
        %2082 = vmatprep.subr.bf16.mxu0 0
        %2083 = vmatpush1.bf16.msra.mxu0 0
        %2084 = vmatprep.subr.bf16.mxu0 0
        %2085 = vmatpush1.bf16.msra.mxu0 0
        %2086 = vmatprep.subr.bf16.mxu0 0
        %2087 = vmatpush1.bf16.msra.mxu0 0
        %2088 = vmatprep.subr.bf16.mxu0 0
        %2089 = vmatpush1.bf16.msra.mxu0 0
        %2090 = vmatprep.subr.bf16.mxu0 0
        %2091 = vmatpush1.bf16.msra.mxu0 0
        %2092 = vmatprep.subr.bf16.mxu0 0
        %2093 = vmatpush1.bf16.msra.mxu0 0
        %2094 = vmatprep.subr.bf16.mxu0 0
        %2095 = vmatpush1.bf16.msra.mxu0 0
        %2096 = vmatprep.subr.bf16.mxu0 0
        %2097 = vmatpush1.bf16.msra.mxu0 0
        %2098 = vmatprep.subr.bf16.mxu0 0
        %2099 = vmatpush1.bf16.msra.mxu0 0
        %2100 = vmatprep.subr.bf16.mxu0 0
        %2101 = vmatpush1.bf16.msra.mxu0 0
        %2102 = vmatprep.subr.bf16.mxu0 0
        %2103 = vmatpush1.bf16.msra.mxu0 0
        %2104 = vmatprep.mubr.bf16.mxu0 0
        %2105 = vmatmul.mubr.bf16.gmra.mrb[0].mxu0 %v2067
        %v2106 = vpop.f32.mrb[0].mxu0
        %v2107 = vadd.f32 0.0, %v2106
        %v2108 = vpop.f32.mrb[0].mxu0
        %v2109 = vpop.f32.mrb[0].mxu0
        %v2110 = vpop.f32.mrb[0].mxu0
        %2111 = vdwg.mxu0
        %v2112 = vpack.c.bf16 %v2107, %v2107
        %v2113 = vld [vmem:[#allocation7 + $0xa0] sm:$0xf]
        %v2114 = vld [vmem:[#allocation7 + $0xa4] sm:$0xf]
        %v2115 = vld [vmem:[#allocation7 + $0xa8] sm:$0xf]
        %v2116 = vld [vmem:[#allocation7 + $0xac] sm:$0xf]
        %v2117 = vld [vmem:[#allocation7 + $0xb0] sm:$0xf]
        %v2118 = vld [vmem:[#allocation7 + $0xb4] sm:$0xf]
        %v2119 = vld [vmem:[#allocation7 + $0xb8] sm:$0xf]
        %v2120 = vld [vmem:[#allocation7 + $0xbc] sm:$0xf]
        %v2129 = vunpack.c.l.b16 %v2113
        %v2130 = vunpack.c.l.b16 %v2114
        %v2131 = vunpack.c.l.b16 %v2115
        %v2132 = vunpack.c.l.b16 %v2116
        %v2133 = vunpack.c.l.b16 %v2117
        %v2134 = vunpack.c.l.b16 %v2118
        %v2135 = vunpack.c.l.b16 %v2119
        %v2136 = vunpack.c.l.b16 %v2120
        %v2137 = vpack.c.b16 %v2130, %v2129
        %v2138 = vpack.c.b16 %v2132, %v2131
        %v2139 = vpack.c.b16 %v2134, %v2133
        %v2140 = vpack.c.b16 %v2136, %v2135
        %v2146 = vsel %vm1069, %v2112, 0
        %2148 = vmatprep.subr.bf16.mxu0 0
        %2149 = vmatpush1.bf16.msra.mxu0 %v2137
        %2150 = vmatprep.subr.bf16.mxu0 0
        %2151 = vmatpush1.bf16.msra.mxu0 %v2138
        %2152 = vmatprep.subr.bf16.mxu0 0
        %2153 = vmatpush1.bf16.msra.mxu0 %v2139
        %2154 = vmatprep.subr.bf16.mxu0 0
        %2155 = vmatpush1.bf16.msra.mxu0 %v2140
        %2156 = vmatprep.subr.bf16.mxu0 0
        %2157 = vmatpush1.bf16.msra.mxu0 0
        %2158 = vmatprep.subr.bf16.mxu0 0
        %2159 = vmatpush1.bf16.msra.mxu0 0
        %2160 = vmatprep.subr.bf16.mxu0 0
        %2161 = vmatpush1.bf16.msra.mxu0 0
        %2162 = vmatprep.subr.bf16.mxu0 0
        %2163 = vmatpush1.bf16.msra.mxu0 0
        %2164 = vmatprep.subr.bf16.mxu0 0
        %2165 = vmatpush1.bf16.msra.mxu0 0
        %2166 = vmatprep.subr.bf16.mxu0 0
        %2167 = vmatpush1.bf16.msra.mxu0 0
        %2168 = vmatprep.subr.bf16.mxu0 0
        %2169 = vmatpush1.bf16.msra.mxu0 0
        %2170 = vmatprep.subr.bf16.mxu0 0
        %2171 = vmatpush1.bf16.msra.mxu0 0
        %2172 = vmatprep.subr.bf16.mxu0 0
        %2173 = vmatpush1.bf16.msra.mxu0 0
        %2174 = vmatprep.subr.bf16.mxu0 0
        %2175 = vmatpush1.bf16.msra.mxu0 0
        %2176 = vmatprep.subr.bf16.mxu0 0
        %2177 = vmatpush1.bf16.msra.mxu0 0
        %2178 = vmatprep.subr.bf16.mxu0 0
        %2179 = vmatpush1.bf16.msra.mxu0 0
        %2180 = vmatprep.mubr.bf16.mxu0 0
        %2181 = vmatmul.mubr.bf16.gmra.mrb[0].mxu0 %v2146
        %v2182 = vpop.f32.mrb[0].mxu0
        %v2183 = vadd.f32 0.0, %v2182
        %v2184 = vpop.f32.mrb[0].mxu0
        %v2185 = vpop.f32.mrb[0].mxu0
        %v2186 = vpop.f32.mrb[0].mxu0
        %2187 = vdwg.mxu0
        %v2188 = vadd.f32 %v1998, %v2183
        %v2189 = vpack.c.bf16 %v898, %v898
        %v2190 = vpack.c.bf16 %v980, %v980
        %v2191 = vpack.c.bf16 %v1062, %v1062
        %v2193 = vsel %vm1069, %v2189, 0
        %v2196 = vsel %vm1069, %v2190, 0
        %2198 = vmatprep.subr.bf16.mxu0 0
        %2199 = vmatpush1.bf16.xpose.msra.mxu0 %v2196
        %2200 = vmatprep.subr.bf16.mxu0 0
        %2201 = vmatpush1.bf16.xpose.msra.mxu0 0
        %2202 = vmatprep.subr.bf16.mxu0 0
        %2203 = vmatpush1.bf16.xpose.msra.mxu0 0
        %2204 = vmatprep.subr.bf16.mxu0 0
        %2205 = vmatpush1.bf16.xpose.msra.mxu0 0
        %2206 = vmatprep.subr.bf16.mxu0 0
        %2207 = vmatpush1.bf16.xpose.msra.mxu0 0
        %2208 = vmatprep.subr.bf16.mxu0 0
        %2209 = vmatpush1.bf16.xpose.msra.mxu0 0
        %2210 = vmatprep.subr.bf16.mxu0 0
        %2211 = vmatpush1.bf16.xpose.msra.mxu0 0
        %2212 = vmatprep.subr.bf16.mxu0 0
        %2213 = vmatpush1.bf16.xpose.msra.mxu0 0
        %2214 = vmatprep.subr.bf16.mxu0 0
        %2215 = vmatpush1.bf16.xpose.msra.mxu0 0
        %2216 = vmatprep.subr.bf16.mxu0 0
        %2217 = vmatpush1.bf16.xpose.msra.mxu0 0
        %2218 = vmatprep.subr.bf16.mxu0 0
        %2219 = vmatpush1.bf16.xpose.msra.mxu0 0
        %2220 = vmatprep.subr.bf16.mxu0 0
        %2221 = vmatpush1.bf16.xpose.msra.mxu0 0
        %2222 = vmatprep.subr.bf16.mxu0 0
        %2223 = vmatpush1.bf16.xpose.msra.mxu0 0
        %2224 = vmatprep.subr.bf16.mxu0 0
        %2225 = vmatpush1.bf16.xpose.msra.mxu0 0
        %2226 = vmatprep.subr.bf16.mxu0 0
        %2227 = vmatpush1.bf16.xpose.msra.mxu0 0
        %2228 = vmatprep.subr.bf16.mxu0 0
        %2229 = vmatpush1.bf16.xpose.msra.mxu0 0
        %2230 = vmatprep.mubr.bf16.mxu0 0
        %2231 = vmatmul.mubr.bf16.gmra.mrb[0].mxu0 %v2193
        %v2232 = vpop.f32.mrb[0].mxu0
        %v2233 = vadd.f32 0.0, %v2232
        %v2234 = vpop.f32.mrb[0].mxu0
        %v2235 = vpop.f32.mrb[0].mxu0
        %v2236 = vpop.f32.mrb[0].mxu0
        %2237 = vdwg.mxu0
        %v2238 = vsel %vm1116, %v2233, -inf
        %2239 = vmax.xlane.f32.xlu0 %v2238
        %v2240 = vpop.xlane.xlu0 %2239
        %v2241 = vsub.f32 %v2233, %v2240
        %v2242 = vmul.f32 %v2241, 1.442695
        %v2243 = vpow.pop %v2242
        %v2244 = vsel %vm1116, %v2243, 0.0
        %2245 = vadd.xlane.f32.xlu0 %v2244
        %v2246 = vpop.xlane.xlu0 %2245
        %v2247 = vrcp.pop %v2246
        %v2248 = vmul.f32 %v2243, %v2247
        %v2249 = vpack.c.bf16 %v2248, %v2248
        %v2251 = vsel %vm1116, %v2249, 0
        %v2254 = vsel %vm1132, %v2191, 0
        %2256 = vmatprep.subr.bf16.mxu0 0
        %2257 = vmatpush1.bf16.msra.mxu0 %v2254
        %2258 = vmatprep.subr.bf16.mxu0 0
        %2259 = vmatpush1.bf16.msra.mxu0 0
        %2260 = vmatprep.subr.bf16.mxu0 0
        %2261 = vmatpush1.bf16.msra.mxu0 0
        %2262 = vmatprep.subr.bf16.mxu0 0
        %2263 = vmatpush1.bf16.msra.mxu0 0
        %2264 = vmatprep.subr.bf16.mxu0 0
        %2265 = vmatpush1.bf16.msra.mxu0 0
        %2266 = vmatprep.subr.bf16.mxu0 0
        %2267 = vmatpush1.bf16.msra.mxu0 0
        %2268 = vmatprep.subr.bf16.mxu0 0
        %2269 = vmatpush1.bf16.msra.mxu0 0
        %2270 = vmatprep.subr.bf16.mxu0 0
        %2271 = vmatpush1.bf16.msra.mxu0 0
        %2272 = vmatprep.subr.bf16.mxu0 0
        %2273 = vmatpush1.bf16.msra.mxu0 0
        %2274 = vmatprep.subr.bf16.mxu0 0
        %2275 = vmatpush1.bf16.msra.mxu0 0
        %2276 = vmatprep.subr.bf16.mxu0 0
        %2277 = vmatpush1.bf16.msra.mxu0 0
        %2278 = vmatprep.subr.bf16.mxu0 0
        %2279 = vmatpush1.bf16.msra.mxu0 0
        %2280 = vmatprep.subr.bf16.mxu0 0
        %2281 = vmatpush1.bf16.msra.mxu0 0
        %2282 = vmatprep.subr.bf16.mxu0 0
        %2283 = vmatpush1.bf16.msra.mxu0 0
        %2284 = vmatprep.subr.bf16.mxu0 0
        %2285 = vmatpush1.bf16.msra.mxu0 0
        %2286 = vmatprep.subr.bf16.mxu0 0
        %2287 = vmatpush1.bf16.msra.mxu0 0
        %2288 = vmatprep.mubr.bf16.mxu0 0
        %2289 = vmatmul.mubr.bf16.gmra.mrb[0].mxu0 %v2251
        %v2290 = vpop.f32.mrb[0].mxu0
        %v2291 = vadd.f32 0.0, %v2290
        %v2292 = vpop.f32.mrb[0].mxu0
        %v2293 = vpop.f32.mrb[0].mxu0
        %v2294 = vpop.f32.mrb[0].mxu0
        %2295 = vdwg.mxu0
        %v2296 = vpack.c.bf16 %v2291, %v2291
        %v2297 = vld [vmem:[#allocation7 + $0xc0] sm:$0xf]
        %v2298 = vld [vmem:[#allocation7 + $0xc4] sm:$0xf]
        %v2299 = vld [vmem:[#allocation7 + $0xc8] sm:$0xf]
        %v2300 = vld [vmem:[#allocation7 + $0xcc] sm:$0xf]
        %v2301 = vld [vmem:[#allocation7 + $0xd0] sm:$0xf]
        %v2302 = vld [vmem:[#allocation7 + $0xd4] sm:$0xf]
        %v2303 = vld [vmem:[#allocation7 + $0xd8] sm:$0xf]
        %v2304 = vld [vmem:[#allocation7 + $0xdc] sm:$0xf]
        %v2313 = vunpack.c.l.b16 %v2297
        %v2314 = vunpack.c.l.b16 %v2298
        %v2315 = vunpack.c.l.b16 %v2299
        %v2316 = vunpack.c.l.b16 %v2300
        %v2317 = vunpack.c.l.b16 %v2301
        %v2318 = vunpack.c.l.b16 %v2302
        %v2319 = vunpack.c.l.b16 %v2303
        %v2320 = vunpack.c.l.b16 %v2304
        %v2321 = vpack.c.b16 %v2314, %v2313
        %v2322 = vpack.c.b16 %v2316, %v2315
        %v2323 = vpack.c.b16 %v2318, %v2317
        %v2324 = vpack.c.b16 %v2320, %v2319
        %v2330 = vsel %vm1069, %v2296, 0
        %2332 = vmatprep.subr.bf16.mxu0 0
        %2333 = vmatpush1.bf16.msra.mxu0 %v2321
        %2334 = vmatprep.subr.bf16.mxu0 0
        %2335 = vmatpush1.bf16.msra.mxu0 %v2322
        %2336 = vmatprep.subr.bf16.mxu0 0
        %2337 = vmatpush1.bf16.msra.mxu0 %v2323
        %2338 = vmatprep.subr.bf16.mxu0 0
        %2339 = vmatpush1.bf16.msra.mxu0 %v2324
        %2340 = vmatprep.subr.bf16.mxu0 0
        %2341 = vmatpush1.bf16.msra.mxu0 0
        %2342 = vmatprep.subr.bf16.mxu0 0
        %2343 = vmatpush1.bf16.msra.mxu0 0
        %2344 = vmatprep.subr.bf16.mxu0 0
        %2345 = vmatpush1.bf16.msra.mxu0 0
        %2346 = vmatprep.subr.bf16.mxu0 0
        %2347 = vmatpush1.bf16.msra.mxu0 0
        %2348 = vmatprep.subr.bf16.mxu0 0
        %2349 = vmatpush1.bf16.msra.mxu0 0
        %2350 = vmatprep.subr.bf16.mxu0 0
        %2351 = vmatpush1.bf16.msra.mxu0 0
        %2352 = vmatprep.subr.bf16.mxu0 0
        %2353 = vmatpush1.bf16.msra.mxu0 0
        %2354 = vmatprep.subr.bf16.mxu0 0
        %2355 = vmatpush1.bf16.msra.mxu0 0
        %2356 = vmatprep.subr.bf16.mxu0 0
        %2357 = vmatpush1.bf16.msra.mxu0 0
        %2358 = vmatprep.subr.bf16.mxu0 0
        %2359 = vmatpush1.bf16.msra.mxu0 0
        %2360 = vmatprep.subr.bf16.mxu0 0
        %2361 = vmatpush1.bf16.msra.mxu0 0
        %2362 = vmatprep.subr.bf16.mxu0 0
        %2363 = vmatpush1.bf16.msra.mxu0 0
        %2364 = vmatprep.mubr.bf16.mxu0 0
        %2365 = vmatmul.mubr.bf16.gmra.mrb[0].mxu0 %v2330
        %v2366 = vpop.f32.mrb[0].mxu0
        %v2367 = vadd.f32 0.0, %v2366
        %v2368 = vpop.f32.mrb[0].mxu0
        %v2369 = vpop.f32.mrb[0].mxu0
        %v2370 = vpop.f32.mrb[0].mxu0
        %2371 = vdwg.mxu0
        %v2372 = vadd.f32 %v2188, %v2367
        %2374 = vrot.lane.b32.xlu0 %v2189, 64
        %v2375 = vpop.permute.xlu0 %2374
        %2377 = vrot.lane.b32.xlu0 %v2190, 64
        %v2378 = vpop.permute.xlu0 %2377
        %v2380 = vsel %vm1069, %v2375, 0
        %v2383 = vsel %vm1069, %v2378, 0
        %2385 = vmatprep.subr.bf16.mxu0 0
        %2386 = vmatpush1.bf16.xpose.msra.mxu0 %v2383
        %2387 = vmatprep.subr.bf16.mxu0 0
        %2388 = vmatpush1.bf16.xpose.msra.mxu0 0
        %2389 = vmatprep.subr.bf16.mxu0 0
        %2390 = vmatpush1.bf16.xpose.msra.mxu0 0
        %2391 = vmatprep.subr.bf16.mxu0 0
        %2392 = vmatpush1.bf16.xpose.msra.mxu0 0
        %2393 = vmatprep.subr.bf16.mxu0 0
        %2394 = vmatpush1.bf16.xpose.msra.mxu0 0
        %2395 = vmatprep.subr.bf16.mxu0 0
        %2396 = vmatpush1.bf16.xpose.msra.mxu0 0
        %2397 = vmatprep.subr.bf16.mxu0 0
        %2398 = vmatpush1.bf16.xpose.msra.mxu0 0
        %2399 = vmatprep.subr.bf16.mxu0 0
        %2400 = vmatpush1.bf16.xpose.msra.mxu0 0
        %2401 = vmatprep.subr.bf16.mxu0 0
        %2402 = vmatpush1.bf16.xpose.msra.mxu0 0
        %2403 = vmatprep.subr.bf16.mxu0 0
        %2404 = vmatpush1.bf16.xpose.msra.mxu0 0
        %2405 = vmatprep.subr.bf16.mxu0 0
        %2406 = vmatpush1.bf16.xpose.msra.mxu0 0
        %2407 = vmatprep.subr.bf16.mxu0 0
        %2408 = vmatpush1.bf16.xpose.msra.mxu0 0
        %2409 = vmatprep.subr.bf16.mxu0 0
        %2410 = vmatpush1.bf16.xpose.msra.mxu0 0
        %2411 = vmatprep.subr.bf16.mxu0 0
        %2412 = vmatpush1.bf16.xpose.msra.mxu0 0
        %2413 = vmatprep.subr.bf16.mxu0 0
        %2414 = vmatpush1.bf16.xpose.msra.mxu0 0
        %2415 = vmatprep.subr.bf16.mxu0 0
        %2416 = vmatpush1.bf16.xpose.msra.mxu0 0
        %2417 = vmatprep.mubr.bf16.mxu0 0
        %2418 = vmatmul.mubr.bf16.gmra.mrb[0].mxu0 %v2380
        %v2419 = vpop.f32.mrb[0].mxu0
        %v2420 = vadd.f32 0.0, %v2419
        %v2421 = vpop.f32.mrb[0].mxu0
        %v2422 = vpop.f32.mrb[0].mxu0
        %v2423 = vpop.f32.mrb[0].mxu0
        %2424 = vdwg.mxu0
        %v2425 = vsel %vm1116, %v2420, -inf
        %2426 = vmax.xlane.f32.xlu0 %v2425
        %v2427 = vpop.xlane.xlu0 %2426
        %v2428 = vsub.f32 %v2420, %v2427
        %v2429 = vmul.f32 %v2428, 1.442695
        %v2430 = vpow.pop %v2429
        %v2431 = vsel %vm1116, %v2430, 0.0
        %2432 = vadd.xlane.f32.xlu0 %v2431
        %v2433 = vpop.xlane.xlu0 %2432
        %v2434 = vrcp.pop %v2433
        %v2435 = vmul.f32 %v2430, %v2434
        %v2436 = vpack.c.bf16 %v2435, %v2435
        %2438 = vrot.lane.b32.xlu0 %v2191, 64
        %v2439 = vpop.permute.xlu0 %2438
        %v2441 = vsel %vm1116, %v2436, 0
        %v2444 = vsel %vm1132, %v2439, 0
        %2446 = vmatprep.subr.bf16.mxu0 0
        %2447 = vmatpush1.bf16.msra.mxu0 %v2444
        %2448 = vmatprep.subr.bf16.mxu0 0
        %2449 = vmatpush1.bf16.msra.mxu0 0
        %2450 = vmatprep.subr.bf16.mxu0 0
        %2451 = vmatpush1.bf16.msra.mxu0 0
        %2452 = vmatprep.subr.bf16.mxu0 0
        %2453 = vmatpush1.bf16.msra.mxu0 0
        %2454 = vmatprep.subr.bf16.mxu0 0
        %2455 = vmatpush1.bf16.msra.mxu0 0
        %2456 = vmatprep.subr.bf16.mxu0 0
        %2457 = vmatpush1.bf16.msra.mxu0 0
        %2458 = vmatprep.subr.bf16.mxu0 0
        %2459 = vmatpush1.bf16.msra.mxu0 0
        %2460 = vmatprep.subr.bf16.mxu0 0
        %2461 = vmatpush1.bf16.msra.mxu0 0
        %2462 = vmatprep.subr.bf16.mxu0 0
        %2463 = vmatpush1.bf16.msra.mxu0 0
        %2464 = vmatprep.subr.bf16.mxu0 0
        %2465 = vmatpush1.bf16.msra.mxu0 0
        %2466 = vmatprep.subr.bf16.mxu0 0
        %2467 = vmatpush1.bf16.msra.mxu0 0
        %2468 = vmatprep.subr.bf16.mxu0 0
        %2469 = vmatpush1.bf16.msra.mxu0 0
        %2470 = vmatprep.subr.bf16.mxu0 0
        %2471 = vmatpush1.bf16.msra.mxu0 0
        %2472 = vmatprep.subr.bf16.mxu0 0
        %2473 = vmatpush1.bf16.msra.mxu0 0
        %2474 = vmatprep.subr.bf16.mxu0 0
        %2475 = vmatpush1.bf16.msra.mxu0 0
        %2476 = vmatprep.subr.bf16.mxu0 0
        %2477 = vmatpush1.bf16.msra.mxu0 0
        %2478 = vmatprep.mubr.bf16.mxu0 0
        %2479 = vmatmul.mubr.bf16.gmra.mrb[0].mxu0 %v2441
        %v2480 = vpop.f32.mrb[0].mxu0
        %v2481 = vadd.f32 0.0, %v2480
        %v2482 = vpop.f32.mrb[0].mxu0
        %v2483 = vpop.f32.mrb[0].mxu0
        %v2484 = vpop.f32.mrb[0].mxu0
        %2485 = vdwg.mxu0
        %v2486 = vpack.c.bf16 %v2481, %v2481
        %v2487 = vld [vmem:[#allocation7 + $0xe0] sm:$0xf]
        %v2488 = vld [vmem:[#allocation7 + $0xe4] sm:$0xf]
        %v2489 = vld [vmem:[#allocation7 + $0xe8] sm:$0xf]
        %v2490 = vld [vmem:[#allocation7 + $0xec] sm:$0xf]
        %v2491 = vld [vmem:[#allocation7 + $0xf0] sm:$0xf]
        %v2492 = vld [vmem:[#allocation7 + $0xf4] sm:$0xf]
        %v2493 = vld [vmem:[#allocation7 + $0xf8] sm:$0xf]
        %v2494 = vld [vmem:[#allocation7 + $0xfc] sm:$0xf]
        %v2503 = vunpack.c.l.b16 %v2487
        %v2504 = vunpack.c.l.b16 %v2488
        %v2505 = vunpack.c.l.b16 %v2489
        %v2506 = vunpack.c.l.b16 %v2490
        %v2507 = vunpack.c.l.b16 %v2491
        %v2508 = vunpack.c.l.b16 %v2492
        %v2509 = vunpack.c.l.b16 %v2493
        %v2510 = vunpack.c.l.b16 %v2494
        %v2511 = vpack.c.b16 %v2504, %v2503
        %v2512 = vpack.c.b16 %v2506, %v2505
        %v2513 = vpack.c.b16 %v2508, %v2507
        %v2514 = vpack.c.b16 %v2510, %v2509
        %v2520 = vsel %vm1069, %v2486, 0
        %2522 = vmatprep.subr.bf16.mxu0 0
        %2523 = vmatpush1.bf16.msra.mxu0 %v2511
        %2524 = vmatprep.subr.bf16.mxu0 0
        %2525 = vmatpush1.bf16.msra.mxu0 %v2512
        %2526 = vmatprep.subr.bf16.mxu0 0
        %2527 = vmatpush1.bf16.msra.mxu0 %v2513
        %2528 = vmatprep.subr.bf16.mxu0 0
        %2529 = vmatpush1.bf16.msra.mxu0 %v2514
        %2530 = vmatprep.subr.bf16.mxu0 0
        %2531 = vmatpush1.bf16.msra.mxu0 0
        %2532 = vmatprep.subr.bf16.mxu0 0
        %2533 = vmatpush1.bf16.msra.mxu0 0
        %2534 = vmatprep.subr.bf16.mxu0 0
        %2535 = vmatpush1.bf16.msra.mxu0 0
        %2536 = vmatprep.subr.bf16.mxu0 0
        %2537 = vmatpush1.bf16.msra.mxu0 0
        %2538 = vmatprep.subr.bf16.mxu0 0
        %2539 = vmatpush1.bf16.msra.mxu0 0
        %2540 = vmatprep.subr.bf16.mxu0 0
        %2541 = vmatpush1.bf16.msra.mxu0 0
        %2542 = vmatprep.subr.bf16.mxu0 0
        %2543 = vmatpush1.bf16.msra.mxu0 0
        %2544 = vmatprep.subr.bf16.mxu0 0
        %2545 = vmatpush1.bf16.msra.mxu0 0
        %2546 = vmatprep.subr.bf16.mxu0 0
        %2547 = vmatpush1.bf16.msra.mxu0 0
        %2548 = vmatprep.subr.bf16.mxu0 0
        %2549 = vmatpush1.bf16.msra.mxu0 0
        %2550 = vmatprep.subr.bf16.mxu0 0
        %2551 = vmatpush1.bf16.msra.mxu0 0
        %2552 = vmatprep.subr.bf16.mxu0 0
        %2553 = vmatpush1.bf16.msra.mxu0 0
        %2554 = vmatprep.mubr.bf16.mxu0 0
        %2555 = vmatmul.mubr.bf16.gmra.mrb[0].mxu0 %v2520
        %v2556 = vpop.f32.mrb[0].mxu0
        %v2557 = vadd.f32 0.0, %v2556
        %v2558 = vpop.f32.mrb[0].mxu0
        %v2559 = vpop.f32.mrb[0].mxu0
        %v2560 = vpop.f32.mrb[0].mxu0
        %2561 = vdwg.mxu0
        %v2562 = vadd.f32 %v2372, %v2557
        %v2563 = vld [vmem:[%s3] sm:$0x1]
        %v2565 = vlaneseq
        %v2566 = vshrl.u32 %v2565, 7
        %v2567 = vsub.s32 0, %v2566
        %v2568 = vrot.slane %v2563, %v2567
        %v2570 = vadd.f32 %v2562, %v2568
        %2571 = vst [vmem:[%s241] sm:$0xff] %v2570
        %s2572 = sand.u32 %s119, 1
        %s2573 = scalar_lea.sflag [#allocation4], %s2572
        %s2574 = sand.u32 %s119, 1
        %s2575 = smul.addr %s2574, 8
        %s2576 = scalar_lea.vmem [#allocation8], %s2575
        // Predicated region
        $region49: #{tpu_custom_call.1} parent=35 // pred_check
          %p2577 = pneg %p129
        $region50: #{tpu_custom_call.1} parent=35 // pred_check_branch
          %2579 = sbr.rel (%p2577) target = $region52
        $region51: #{tpu_custom_call.1} parent=35 // pred_region
          %s2581 = ssub.s32 128, 128
          %2582 = vsyncadd %s2573, %s2581
          %s2583 = smul.addr %s22, 128
          %s2584 = scalar_lea.hbm %s4, %s2583
          %s2586 = sshll.u32 %s2576, 4
          %s2587 = int_to_ptr.vmem [resolvable:$true] %s2586
          %2589 = dma.vmem_to_hbm [thread:$0]  %s2587, 128, %s2584, %s2573
        $region52: #{tpu_custom_call.1} parent=35 // pred_fallthru
          _
      $region36: #{tpu_custom_call.1} parent=5 // pred_fallthru
        _
      %p2590 = scmp.le.s32.totalorder 2, %s17
      // Predicated region
      $region53: #{tpu_custom_call.1} parent=5 // pred_check
        %p2591 = pneg %p2590
      $region54: #{tpu_custom_call.1} parent=5 // pred_check_branch
        %2593 = sbr.rel (%p2591) target = $region56
      $region55: #{tpu_custom_call.1} parent=5 // pred_region
        %s2594 = ssub.s32 %s17, 2
        // Predicated region
        $region57: #{tpu_custom_call.1} parent=55 // pred_check
          %p2595 = pneg %p135
        $region58: #{tpu_custom_call.1} parent=55 // pred_check_branch
          %2597 = sbr.rel (%p2595) target = $region60
        $region59: #{tpu_custom_call.1} parent=55 // pred_region
          %s2598 = sand.u32 %s120, 1
          %s2599 = scalar_lea.sflag [#allocation4], %s2598
          %s2600 = sand.u32 %s120, 1
          %s2601 = smul.addr %s2600, 8
          %s2602 = scalar_lea.vmem [#allocation8], %s2601
          %2603 = dma.done %s2599, 128
        $region60: #{tpu_custom_call.1} parent=55 // pred_fallthru
          _
      $region56: #{tpu_custom_call.1} parent=5 // pred_fallthru
        _
    $region6: #{tpu_custom_call.1} parent=1 // loop_footer
      %s21 = sadd.s32 1, %s17
    $region7: #{tpu_custom_call.1} parent=1 // loop_footer_branch
      %16 = sbr.rel target = $region3
    $region8: #{tpu_custom_call.1} parent=1 // loop_exit
      _
    %2604 = vsyncpa [#allocation3], 1
    %s2605 = scalar_lea.sflag [#allocation3], 1
    %2606 = vsyncpa %s2605, 1
    %2607 = vsyncpa [#allocation6], 1
    %2608 = vsyncpa [#allocation4], 1
    %s2609 = scalar_lea.sflag [#allocation4], 1
    %2610 = vsyncpa %s2609, 1

</llo_original>
